<compile_context>
chip_gen: v7x
topology: tpu7x:2x2x1
jax: 0.10.0
libtpu: 0.0.40
codegen_flags: <defaults>
</compile_context>

<pallas_src>
import functools
import math

import jax
import jax.numpy as jnp
from jax import lax
from jax.experimental import pallas as pl
from jax.experimental.pallas import tpu as pltpu


# ----------------------- fused (both-direction) LSTM kernel -------------------

def _bilstm_chunk_kernel(gx_ref, whh_ref, *refs, emit_y):
    """Processes one time-chunk of the serialized recurrence, BOTH directions.

    gx_ref:   (TC, B, 8H) bf16  precomputed input gates, step-ordered: row s is
                                [forward gates at time s | reverse gates at time
                                T-1-s], gate-major (i,f,g,o), direction-minor.
    whh_ref:  (2H, 8H)    bf16  block-diagonal recurrent weights (VMEM-resident).
    y_ref:    (TC, B, 2H) bf16  per-step hidden [h_f(s) | h_r(T-1-s)] (if emit_y).
    pool_ref: (1, TC, 2H) f32   per-step batch-sum of the hidden state.
    h_scr/c_scr: (B, 2H)  f32   recurrent state carried across chunks.
    """
    if emit_y:
        y_ref, pool_ref, h_scr, c_scr = refs
    else:
        y_ref = None
        pool_ref, h_scr, c_scr = refs

    t_chunk = gx_ref.shape[0]
    H2 = whh_ref.shape[0]           # 2 * hidden_dim

    @pl.when(pl.program_id(0) == 0)
    def _init():
        h_scr[...] = jnp.zeros_like(h_scr)
        c_scr[...] = jnp.zeros_like(c_scr)

    def step(s, carry):
        h, c = carry
        # One MXU matmul per timestep covers both directions (block-diag W_hh);
        # weights are read straight from the resident VMEM ref.
        gates = gx_ref[s].astype(jnp.float32) + jnp.dot(
            h.astype(jnp.bfloat16), whh_ref[...],
            preferred_element_type=jnp.float32)
        i_g = jax.nn.sigmoid(gates[:, 0 * H2:1 * H2])
        f_g = jax.nn.sigmoid(gates[:, 1 * H2:2 * H2])
        g_g = jnp.tanh(gates[:, 2 * H2:3 * H2])
        o_g = jax.nn.sigmoid(gates[:, 3 * H2:4 * H2])
        c_new = f_g * c + i_g * g_g
        h_new = o_g * jnp.tanh(c_new)
        if emit_y:
            y_ref[s] = h_new.astype(y_ref.dtype)
        # Incremental pool accumulation (cross-sublane reduce, co-issues on XLU).
        pool_ref[0, pl.ds(s, 1), :] = jnp.sum(h_new, axis=0, keepdims=True)
        return h_new, c_new

    h_fin, c_fin = lax.fori_loop(0, t_chunk, step, (h_scr[...], c_scr[...]),
                                 unroll=4)
    h_scr[...] = h_fin
    c_scr[...] = c_fin


def bilstm_layer(gx, whh_blk, *, t_chunk, emit_y):
    """gx: (T, B, 8H) bf16, whh_blk: (2H, 8H) bf16 ->
       (y: (T, B, 2H) bf16 or None, pool_steps: (T, 2H) f32)."""
    T, B, G8 = gx.shape
    H2 = G8 // 4
    assert T % t_chunk == 0, (T, t_chunk)
    n_chunks = T // t_chunk

    out_shape = [jax.ShapeDtypeStruct((n_chunks, t_chunk, H2), jnp.float32)]
    out_specs = [pl.BlockSpec((1, t_chunk, H2), lambda i: (i, 0, 0))]
    if emit_y:
        out_shape.insert(0, jax.ShapeDtypeStruct((T, B, H2), jnp.bfloat16))
        out_specs.insert(0, pl.BlockSpec((t_chunk, B, H2), lambda i: (i, 0, 0)))

    outs = pl.pallas_call(
        functools.partial(_bilstm_chunk_kernel, emit_y=emit_y),
        out_shape=tuple(out_shape),
        grid_spec=pltpu.PrefetchScalarGridSpec(
            num_scalar_prefetch=0,
            grid=(n_chunks,),
            in_specs=[
                pl.BlockSpec((t_chunk, B, G8), lambda i: (i, 0, 0)),  # streamed
                pl.BlockSpec((H2, G8), lambda i: (0, 0)),             # resident
            ],
            out_specs=out_specs,
            scratch_shapes=[pltpu.VMEM((B, H2), jnp.float32),   # h carry
                            pltpu.VMEM((B, H2), jnp.float32)],  # c carry
        ),
        compiler_params=pltpu.CompilerParams(
            dimension_semantics=("arbitrary",),        # carried recurrence axis
            vmem_limit_bytes=32 * 1024 * 1024),
    )(gx, whh_blk)

    if emit_y:
        y, pool = outs
    else:
        y = None
        (pool,) = outs
    return y, pool.reshape(T, H2)


# ------------------------ wrapper-side weight / gate packing ------------------

def _fuse_whh(w_hh):
    """(2, H, 4H) per-direction W_hh^T -> (2H, 8H) block-diagonal matrix with
    gate-major, direction-minor columns [i_f|i_r|f_f|f_r|g_f|g_r|o_f|o_r]."""
    H = w_hh.shape[1]
    w = w_hh.reshape(2, H, 4, H)                    # [dir, j, gate, k]
    blk = jnp.zeros((2, H, 4, 2, H), w_hh.dtype)    # [dir, j, gate, dir', k]
    blk = blk.at[0, :, :, 0, :].set(w[0])
    blk = blk.at[1, :, :, 1, :].set(w[1])
    return blk.reshape(2 * H, 8 * H)


def _fuse_gx(gf, gr, H):
    """Interleave forward/reverse (T,B,4H) gate pre-activations into (T,B,8H)
    matching the _fuse_whh column layout.  gr must be reverse-time ordered."""
    T, B, _ = gf.shape
    g = jnp.stack([gf.reshape(T, B, 4, H), gr.reshape(T, B, 4, H)], axis=3)
    return g.reshape(T, B, 8 * H).astype(jnp.bfloat16)


# ------------------------------- module forward -------------------------------

def init_params(key, embedding_dim, hidden_dim, n_layers):
    """PyTorch-style U(-1/sqrt(H), 1/sqrt(H)) init, stacked per direction.

    Per layer: (W_ih^T: (2, in, 4H), W_hh^T: (2, H, 4H), b_ih + b_hh: (2, 4H)).
    Gate order i, f, g, o as in PyTorch.
    """
    bound = 1.0 / math.sqrt(hidden_dim)
    params = []
    for layer in range(n_layers):
        in_size = embedding_dim if layer == 0 else 2 * hidden_dim
        key, k1, k2, k3, k4 = jax.random.split(key, 5)
        w_ih = jax.random.uniform(k1, (2, in_size, 4 * hidden_dim),
                                  jnp.float32, -bound, bound)
        w_hh = jax.random.uniform(k2, (2, hidden_dim, 4 * hidden_dim),
                                  jnp.float32, -bound, bound)
        b_ih = jax.random.uniform(k3, (2, 4 * hidden_dim), jnp.float32,
                                  -bound, bound)
        b_hh = jax.random.uniform(k4, (2, 4 * hidden_dim), jnp.float32,
                                  -bound, bound)
        params.append((w_ih, w_hh, b_ih + b_hh))
    return params


def batch_descriptor_forward(x, x_original_length, params, *, t_chunk):
    """x: (T, B, E), x_original_length: (T,) -> (T, 2*H)."""
    T, B, _ = x.shape
    H = params[0][1].shape[1]
    inv_len = (1.0 / x_original_length.astype(jnp.float32))[:, None]   # (T, 1)

    y = None
    pool_steps = None
    n_layers = len(params)
    for li, (w_ih, w_hh, b) in enumerate(params):
        last = li == n_layers - 1
        if li == 0:
            # Hoisted input projection for all T, both directions, one big
            # matmul each; reverse direction projected in reverse-time order.
            gf = jnp.einsum("tbf,fg->tbg", x, w_ih[0],
                            preferred_element_type=jnp.float32) + b[0]
            gr = jnp.einsum("tbf,fg->tbg", x[::-1], w_ih[1],
                            preferred_element_type=jnp.float32) + b[1]
        else:
            # y is step-ordered: y[s,:, :H] = h_f(time s), y[s,:, H:] = h_r(T-1-s).
            yf = y[:, :, :H]
            yr = y[:, :, H:]
            gf = (jnp.einsum("tbh,hg->tbg", yf, w_ih[0, :H],
                             preferred_element_type=jnp.float32)
                  + jnp.einsum("tbh,hg->tbg", yr[::-1], w_ih[0, H:],
                               preferred_element_type=jnp.float32) + b[0])
            gr = (jnp.einsum("tbh,hg->tbg", yf[::-1], w_ih[1, :H],
                             preferred_element_type=jnp.float32)
                  + jnp.einsum("tbh,hg->tbg", yr, w_ih[1, H:],
                               preferred_element_type=jnp.float32) + b[1])
        gx = _fuse_gx(gf, gr, H)                               # (T, B, 8H) bf16
        whh_blk = _fuse_whh(w_hh).astype(jnp.bfloat16)         # (2H, 8H) bf16
        y, pool_steps = bilstm_layer(gx, whh_blk, t_chunk=t_chunk,
                                     emit_y=not last)

    # pool_steps is step-ordered: reorder the reverse half back to time order,
    # then normalize by the precomputed 1/length. PyTorch [fwd | rev] feature order.
    pool = jnp.concatenate([pool_steps[:, :H], pool_steps[::-1, H:]], axis=-1)
    return pool * inv_len


# ------------------------------ pure-JAX reference ----------------------------

def _lstm_ref_dir(x, wih_t, whh_t, b):
    H = whh_t.shape[0]
    B = x.shape[1]

    def step(carry, x_t):
        h, c = carry
        gates = x_t @ wih_t + h @ whh_t + b
        i = jax.nn.sigmoid(gates[:, :H])
        f = jax.nn.sigmoid(gates[:, H:2 * H])
        g = jnp.tanh(gates[:, 2 * H:3 * H])
        o = jax.nn.sigmoid(gates[:, 3 * H:])
        c = f * c + i * g
        h = o * jnp.tanh(c)
        return (h, c), h

    init = (jnp.zeros((B, H), jnp.float32), jnp.zeros((B, H), jnp.float32))
    _, hs = lax.scan(step, init, x)
    return hs


def batch_descriptor_ref(x, x_original_length, params):
    h = x
    for (w_ih, w_hh, b) in params:
        out_f = _lstm_ref_dir(h, w_ih[0], w_hh[0], b[0])
        out_r = _lstm_ref_dir(h[::-1], w_ih[1], w_hh[1], b[1])[::-1]
        h = jnp.concatenate([out_f, out_r], axis=-1)
    return jnp.sum(h, axis=1) / x_original_length[:, None]


# ----------------------------------- main --------------------------------------

if __name__ == "__main__":
    T, B, E, H, NL = 8, 2, 16, 32, 2
    T_CHUNK = 4   # 2 chunks -> exercises the cross-chunk h/c carry path

    key = jax.random.PRNGKey(0)
    kx, kl, kp = jax.random.split(key, 3)

    x = jax.random.normal(kx, (T, B, E), jnp.float32)
    # "original lengths" (positive), shape (T,) -> unsqueeze(1) broadcast as in avgPool
    x_original_length = jax.random.uniform(kl, (T,), jnp.float32, 1.0, float(B))

    params = init_params(kp, E, H, NL)

    fwd = jax.jit(functools.partial(batch_descriptor_forward, t_chunk=T_CHUNK))
    out = jax.block_until_ready(fwd(x, x_original_length, params))
    assert out.shape == (T, 2 * H), out.shape

    ref = jax.block_until_ready(batch_descriptor_ref(x, x_original_length, params))
    max_err = float(jnp.max(jnp.abs(out - ref)))
    # bf16 storage of gx / W_hh / y -> looser tolerance than pure f32.
    assert jnp.allclose(out, ref, atol=2e-2, rtol=2e-2), max_err

    print("KERNEL_OK")
</pallas_src>

<mosaic_0001>
module attributes {stable_mosaic.version = 11 : i64} {
  func.func @_bilstm_chunk_kernel(%arg0: i32, %arg1: memref<4x2x256xbf16, #tpu.memory_space<vmem>>, %arg2: memref<64x256xbf16, #tpu.memory_space<vmem>>, %arg3: memref<4x2x64xbf16, #tpu.memory_space<vmem>>, %arg4: memref<1x4x64xf32, #tpu.memory_space<vmem>>, %arg5: memref<2x64xf32, #tpu.memory_space<vmem>>, %arg6: memref<2x64xf32, #tpu.memory_space<vmem>>) attributes {dimension_semantics = [#tpu.dimension_semantics<arbitrary>], iteration_bounds = array<i64: 2>, scalar_prefetch = 0 : i64, scratch_operands = 2 : i64, tpu.core_type = #tpu.core_type<tc>, window_params = [{transform_indices = @transform_0, window_bounds = array<i64: 4, 2, 256>}, {pipeline_mode = #tpu.pipeline_mode<synchronous>, transform_indices = @transform_1, window_bounds = array<i64: 64, 256>}, {transform_indices = @transform_2, window_bounds = array<i64: 4, 2, 64>}, {transform_indices = @transform_3, window_bounds = array<i64: 1, 4, 64>}]} {
    %c0_i32 = arith.constant 0 : i32
    %0 = arith.cmpi eq, %arg0, %c0_i32 : i32
    %1 = arith.extui %0 : i1 to i32
    %c0_i32_0 = arith.constant 0 : i32
    %2 = arith.cmpi ne, %1, %c0_i32_0 : i32
    scf.if %2 {
      %cst_60 = arith.constant 0.000000e+00 : f32
      %183 = vector.broadcast %cst_60 : f32 to vector<2x64xf32>
      %c0_61 = arith.constant 0 : index
      %c0_62 = arith.constant 0 : index
      %184 = vector.load %arg5[%c0_61, %c0_62] : memref<2x64xf32, #tpu.memory_space<vmem>>, vector<2x64xf32>
      tpu.vector_store %arg5[%c0_61, %c0_62], %183 {strides = array<i32>} : memref<2x64xf32, #tpu.memory_space<vmem>>, vector<2x64xf32>,
      %cst_63 = arith.constant 0.000000e+00 : f32
      %185 = vector.broadcast %cst_63 : f32 to vector<2x64xf32>
      %c0_64 = arith.constant 0 : index
      %c0_65 = arith.constant 0 : index
      %186 = vector.load %arg6[%c0_64, %c0_65] : memref<2x64xf32, #tpu.memory_space<vmem>>, vector<2x64xf32>
      tpu.vector_store %arg6[%c0_64, %c0_65], %185 {strides = array<i32>} : memref<2x64xf32, #tpu.memory_space<vmem>>, vector<2x64xf32>,
    } else {
    }
    %c0 = arith.constant 0 : index
    %c0_1 = arith.constant 0 : index
    %3 = vector.load %arg5[%c0, %c0_1] : memref<2x64xf32, #tpu.memory_space<vmem>>, vector<2x64xf32>
    %c0_2 = arith.constant 0 : index
    %c0_3 = arith.constant 0 : index
    %4 = vector.load %arg6[%c0_2, %c0_3] : memref<2x64xf32, #tpu.memory_space<vmem>>, vector<2x64xf32>
    %c0_i32_4 = arith.constant 0 : i32
    %5 = arith.index_cast %c0_i32_4 : i32 to index
    %c0_5 = arith.constant 0 : index
    %c0_6 = arith.constant 0 : index
    %6 = vector.load %arg1[%5, %c0_5, %c0_6] : memref<4x2x256xbf16, #tpu.memory_space<vmem>>, vector<1x2x256xbf16>
    %7 = vector.shape_cast %6 : vector<1x2x256xbf16> to vector<2x256xbf16>
    %8 = arith.extf %7 : vector<2x256xbf16> to vector<2x256xf32>
    %9 = arith.truncf %3 : vector<2x64xf32> to vector<2x64xbf16>
    %c0_7 = arith.constant 0 : index
    %c0_8 = arith.constant 0 : index
    %10 = vector.load %arg2[%c0_7, %c0_8] : memref<64x256xbf16, #tpu.memory_space<vmem>>, vector<64x256xbf16>
    %cst = arith.constant dense<0.000000e+00> : vector<2x256xf32>
    %11 = tpu.matmul %9, %10, %cst {dimension_numbers = #tpu.dot_dimension_numbers<[1], [0], [0], [1], [0, 0, 1, 1], [], []>} : vector<2x64xbf16>, vector<64x256xbf16>, vector<2x256xf32> -> vector<2x256xf32>
    %12 = arith.addf %8, %11 : vector<2x256xf32>
    %13 = vector.extract_strided_slice %12 {offsets = [0, 0], sizes = [2, 64], strides = [1, 1]} : vector<2x256xf32> to vector<2x64xf32>
    %14 = arith.negf %13 : vector<2x64xf32>
    %15 = math.exp %14 : vector<2x64xf32>
    %cst_9 = arith.constant 1.000000e+00 : f32
    %16 = vector.broadcast %cst_9 : f32 to vector<2x64xf32>
    %17 = arith.addf %16, %15 : vector<2x64xf32>
    %18 = arith.divf %16, %17 : vector<2x64xf32>
    %19 = vector.extract_strided_slice %12 {offsets = [0, 64], sizes = [2, 64], strides = [1, 1]} : vector<2x256xf32> to vector<2x64xf32>
    %20 = arith.negf %19 : vector<2x64xf32>
    %21 = math.exp %20 : vector<2x64xf32>
    %cst_10 = arith.constant 1.000000e+00 : f32
    %22 = vector.broadcast %cst_10 : f32 to vector<2x64xf32>
    %23 = arith.addf %22, %21 : vector<2x64xf32>
    %24 = arith.divf %22, %23 : vector<2x64xf32>
    %25 = vector.extract_strided_slice %12 {offsets = [0, 128], sizes = [2, 64], strides = [1, 1]} : vector<2x256xf32> to vector<2x64xf32>
    %26 = math.tanh %25 : vector<2x64xf32>
    %27 = vector.extract_strided_slice %12 {offsets = [0, 192], sizes = [2, 64], strides = [1, 1]} : vector<2x256xf32> to vector<2x64xf32>
    %28 = arith.negf %27 : vector<2x64xf32>
    %29 = math.exp %28 : vector<2x64xf32>
    %cst_11 = arith.constant 1.000000e+00 : f32
    %30 = vector.broadcast %cst_11 : f32 to vector<2x64xf32>
    %31 = arith.addf %30, %29 : vector<2x64xf32>
    %32 = arith.divf %30, %31 : vector<2x64xf32>
    %33 = arith.mulf %24, %4 : vector<2x64xf32>
    %34 = arith.mulf %18, %26 : vector<2x64xf32>
    %35 = arith.addf %33, %34 : vector<2x64xf32>
    %36 = math.tanh %35 : vector<2x64xf32>
    %37 = arith.mulf %32, %36 : vector<2x64xf32>
    %38 = arith.truncf %37 : vector<2x64xf32> to vector<2x64xbf16>
    %39 = arith.index_cast %c0_i32_4 : i32 to index
    %c0_12 = arith.constant 0 : index
    %c0_13 = arith.constant 0 : index
    %40 = vector.load %arg3[%39, %c0_12, %c0_13] : memref<4x2x64xbf16, #tpu.memory_space<vmem>>, vector<1x2x64xbf16>
    %41 = vector.shape_cast %40 : vector<1x2x64xbf16> to vector<2x64xbf16>
    %42 = vector.shape_cast %38 : vector<2x64xbf16> to vector<1x2x64xbf16>
    tpu.vector_store %arg3[%39, %c0_12, %c0_13], %42 {strides = array<i32>} : memref<4x2x64xbf16, #tpu.memory_space<vmem>>, vector<1x2x64xbf16>,
    %cst_14 = arith.constant dense<0.000000e+00> : vector<64xf32>
    %43 = vector.multi_reduction <add>, %37, %cst_14 [0] : vector<2x64xf32> to vector<64xf32>
    %44 = vector.shape_cast %43 : vector<64xf32> to vector<1x64xf32>
    %c0_15 = arith.constant 0 : index
    %45 = arith.index_cast %c0_i32_4 : i32 to index
    %c0_16 = arith.constant 0 : index
    %46 = vector.load %arg4[%c0_15, %45, %c0_16] : memref<1x4x64xf32, #tpu.memory_space<vmem>>, vector<1x1x64xf32>
    %47 = vector.shape_cast %46 : vector<1x1x64xf32> to vector<1x64xf32>
    %48 = vector.shape_cast %44 : vector<1x64xf32> to vector<1x1x64xf32>
    tpu.vector_store %arg4[%c0_15, %45, %c0_16], %48 {strides = array<i32>} : memref<1x4x64xf32, #tpu.memory_space<vmem>>, vector<1x1x64xf32>,
    %c1_i32 = arith.constant 1 : i32
    %49 = arith.index_cast %c1_i32 : i32 to index
    %c0_17 = arith.constant 0 : index
    %c0_18 = arith.constant 0 : index
    %50 = vector.load %arg1[%49, %c0_17, %c0_18] : memref<4x2x256xbf16, #tpu.memory_space<vmem>>, vector<1x2x256xbf16>
    %51 = vector.shape_cast %50 : vector<1x2x256xbf16> to vector<2x256xbf16>
    %52 = arith.extf %51 : vector<2x256xbf16> to vector<2x256xf32>
    %53 = arith.truncf %37 : vector<2x64xf32> to vector<2x64xbf16>
    %c0_19 = arith.constant 0 : index
    %c0_20 = arith.constant 0 : index
    %54 = vector.load %arg2[%c0_19, %c0_20] : memref<64x256xbf16, #tpu.memory_space<vmem>>, vector<64x256xbf16>
    %cst_21 = arith.constant dense<0.000000e+00> : vector<2x256xf32>
    %55 = tpu.matmul %53, %54, %cst_21 {dimension_numbers = #tpu.dot_dimension_numbers<[1], [0], [0], [1], [0, 0, 1, 1], [], []>} : vector<2x64xbf16>, vector<64x256xbf16>, vector<2x256xf32> -> vector<2x256xf32>
    %56 = arith.addf %52, %55 : vector<2x256xf32>
    %57 = vector.extract_strided_slice %56 {offsets = [0, 0], sizes = [2, 64], strides = [1, 1]} : vector<2x256xf32> to vector<2x64xf32>
    %58 = arith.negf %57 : vector<2x64xf32>
    %59 = math.exp %58 : vector<2x64xf32>
    %cst_22 = arith.constant 1.000000e+00 : f32
    %60 = vector.broadcast %cst_22 : f32 to vector<2x64xf32>
    %61 = arith.addf %60, %59 : vector<2x64xf32>
    %62 = arith.divf %60, %61 : vector<2x64xf32>
    %63 = vector.extract_strided_slice %56 {offsets = [0, 64], sizes = [2, 64], strides = [1, 1]} : vector<2x256xf32> to vector<2x64xf32>
    %64 = arith.negf %63 : vector<2x64xf32>
    %65 = math.exp %64 : vector<2x64xf32>
    %cst_23 = arith.constant 1.000000e+00 : f32
    %66 = vector.broadcast %cst_23 : f32 to vector<2x64xf32>
    %67 = arith.addf %66, %65 : vector<2x64xf32>
    %68 = arith.divf %66, %67 : vector<2x64xf32>
    %69 = vector.extract_strided_slice %56 {offsets = [0, 128], sizes = [2, 64], strides = [1, 1]} : vector<2x256xf32> to vector<2x64xf32>
    %70 = math.tanh %69 : vector<2x64xf32>
    %71 = vector.extract_strided_slice %56 {offsets = [0, 192], sizes = [2, 64], strides = [1, 1]} : vector<2x256xf32> to vector<2x64xf32>
    %72 = arith.negf %71 : vector<2x64xf32>
    %73 = math.exp %72 : vector<2x64xf32>
    %cst_24 = arith.constant 1.000000e+00 : f32
    %74 = vector.broadcast %cst_24 : f32 to vector<2x64xf32>
    %75 = arith.addf %74, %73 : vector<2x64xf32>
    %76 = arith.divf %74, %75 : vector<2x64xf32>
    %77 = arith.mulf %68, %35 : vector<2x64xf32>
    %78 = arith.mulf %62, %70 : vector<2x64xf32>
    %79 = arith.addf %77, %78 : vector<2x64xf32>
    %80 = math.tanh %79 : vector<2x64xf32>
    %81 = arith.mulf %76, %80 : vector<2x64xf32>
    %82 = arith.truncf %81 : vector<2x64xf32> to vector<2x64xbf16>
    %83 = arith.index_cast %c1_i32 : i32 to index
    %c0_25 = arith.constant 0 : index
    %c0_26 = arith.constant 0 : index
    %84 = vector.load %arg3[%83, %c0_25, %c0_26] : memref<4x2x64xbf16, #tpu.memory_space<vmem>>, vector<1x2x64xbf16>
    %85 = vector.shape_cast %84 : vector<1x2x64xbf16> to vector<2x64xbf16>
    %86 = vector.shape_cast %82 : vector<2x64xbf16> to vector<1x2x64xbf16>
    tpu.vector_store %arg3[%83, %c0_25, %c0_26], %86 {strides = array<i32>} : memref<4x2x64xbf16, #tpu.memory_space<vmem>>, vector<1x2x64xbf16>,
    %cst_27 = arith.constant dense<0.000000e+00> : vector<64xf32>
    %87 = vector.multi_reduction <add>, %81, %cst_27 [0] : vector<2x64xf32> to vector<64xf32>
    %88 = vector.shape_cast %87 : vector<64xf32> to vector<1x64xf32>
    %c0_28 = arith.constant 0 : index
    %89 = arith.index_cast %c1_i32 : i32 to index
    %c0_29 = arith.constant 0 : index
    %90 = vector.load %arg4[%c0_28, %89, %c0_29] : memref<1x4x64xf32, #tpu.memory_space<vmem>>, vector<1x1x64xf32>
    %91 = vector.shape_cast %90 : vector<1x1x64xf32> to vector<1x64xf32>
    %92 = vector.shape_cast %88 : vector<1x64xf32> to vector<1x1x64xf32>
    tpu.vector_store %arg4[%c0_28, %89, %c0_29], %92 {strides = array<i32>} : memref<1x4x64xf32, #tpu.memory_space<vmem>>, vector<1x1x64xf32>,
    %c2_i32 = arith.constant 2 : i32
    %93 = arith.index_cast %c2_i32 : i32 to index
    %c0_30 = arith.constant 0 : index
    %c0_31 = arith.constant 0 : index
    %94 = vector.load %arg1[%93, %c0_30, %c0_31] : memref<4x2x256xbf16, #tpu.memory_space<vmem>>, vector<1x2x256xbf16>
    %95 = vector.shape_cast %94 : vector<1x2x256xbf16> to vector<2x256xbf16>
    %96 = arith.extf %95 : vector<2x256xbf16> to vector<2x256xf32>
    %97 = arith.truncf %81 : vector<2x64xf32> to vector<2x64xbf16>
    %c0_32 = arith.constant 0 : index
    %c0_33 = arith.constant 0 : index
    %98 = vector.load %arg2[%c0_32, %c0_33] : memref<64x256xbf16, #tpu.memory_space<vmem>>, vector<64x256xbf16>
    %cst_34 = arith.constant dense<0.000000e+00> : vector<2x256xf32>
    %99 = tpu.matmul %97, %98, %cst_34 {dimension_numbers = #tpu.dot_dimension_numbers<[1], [0], [0], [1], [0, 0, 1, 1], [], []>} : vector<2x64xbf16>, vector<64x256xbf16>, vector<2x256xf32> -> vector<2x256xf32>
    %100 = arith.addf %96, %99 : vector<2x256xf32>
    %101 = vector.extract_strided_slice %100 {offsets = [0, 0], sizes = [2, 64], strides = [1, 1]} : vector<2x256xf32> to vector<2x64xf32>
    %102 = arith.negf %101 : vector<2x64xf32>
    %103 = math.exp %102 : vector<2x64xf32>
    %cst_35 = arith.constant 1.000000e+00 : f32
    %104 = vector.broadcast %cst_35 : f32 to vector<2x64xf32>
    %105 = arith.addf %104, %103 : vector<2x64xf32>
    %106 = arith.divf %104, %105 : vector<2x64xf32>
    %107 = vector.extract_strided_slice %100 {offsets = [0, 64], sizes = [2, 64], strides = [1, 1]} : vector<2x256xf32> to vector<2x64xf32>
    %108 = arith.negf %107 : vector<2x64xf32>
    %109 = math.exp %108 : vector<2x64xf32>
    %cst_36 = arith.constant 1.000000e+00 : f32
    %110 = vector.broadcast %cst_36 : f32 to vector<2x64xf32>
    %111 = arith.addf %110, %109 : vector<2x64xf32>
    %112 = arith.divf %110, %111 : vector<2x64xf32>
    %113 = vector.extract_strided_slice %100 {offsets = [0, 128], sizes = [2, 64], strides = [1, 1]} : vector<2x256xf32> to vector<2x64xf32>
    %114 = math.tanh %113 : vector<2x64xf32>
    %115 = vector.extract_strided_slice %100 {offsets = [0, 192], sizes = [2, 64], strides = [1, 1]} : vector<2x256xf32> to vector<2x64xf32>
    %116 = arith.negf %115 : vector<2x64xf32>
    %117 = math.exp %116 : vector<2x64xf32>
    %cst_37 = arith.constant 1.000000e+00 : f32
    %118 = vector.broadcast %cst_37 : f32 to vector<2x64xf32>
    %119 = arith.addf %118, %117 : vector<2x64xf32>
    %120 = arith.divf %118, %119 : vector<2x64xf32>
    %121 = arith.mulf %112, %79 : vector<2x64xf32>
    %122 = arith.mulf %106, %114 : vector<2x64xf32>
    %123 = arith.addf %121, %122 : vector<2x64xf32>
    %124 = math.tanh %123 : vector<2x64xf32>
    %125 = arith.mulf %120, %124 : vector<2x64xf32>
    %126 = arith.truncf %125 : vector<2x64xf32> to vector<2x64xbf16>
    %127 = arith.index_cast %c2_i32 : i32 to index
    %c0_38 = arith.constant 0 : index
    %c0_39 = arith.constant 0 : index
    %128 = vector.load %arg3[%127, %c0_38, %c0_39] : memref<4x2x64xbf16, #tpu.memory_space<vmem>>, vector<1x2x64xbf16>
    %129 = vector.shape_cast %128 : vector<1x2x64xbf16> to vector<2x64xbf16>
    %130 = vector.shape_cast %126 : vector<2x64xbf16> to vector<1x2x64xbf16>
    tpu.vector_store %arg3[%127, %c0_38, %c0_39], %130 {strides = array<i32>} : memref<4x2x64xbf16, #tpu.memory_space<vmem>>, vector<1x2x64xbf16>,
    %cst_40 = arith.constant dense<0.000000e+00> : vector<64xf32>
    %131 = vector.multi_reduction <add>, %125, %cst_40 [0] : vector<2x64xf32> to vector<64xf32>
    %132 = vector.shape_cast %131 : vector<64xf32> to vector<1x64xf32>
    %c0_41 = arith.constant 0 : index
    %133 = arith.index_cast %c2_i32 : i32 to index
    %c0_42 = arith.constant 0 : index
    %134 = vector.load %arg4[%c0_41, %133, %c0_42] : memref<1x4x64xf32, #tpu.memory_space<vmem>>, vector<1x1x64xf32>
    %135 = vector.shape_cast %134 : vector<1x1x64xf32> to vector<1x64xf32>
    %136 = vector.shape_cast %132 : vector<1x64xf32> to vector<1x1x64xf32>
    tpu.vector_store %arg4[%c0_41, %133, %c0_42], %136 {strides = array<i32>} : memref<1x4x64xf32, #tpu.memory_space<vmem>>, vector<1x1x64xf32>,
    %c3_i32 = arith.constant 3 : i32
    %137 = arith.index_cast %c3_i32 : i32 to index
    %c0_43 = arith.constant 0 : index
    %c0_44 = arith.constant 0 : index
    %138 = vector.load %arg1[%137, %c0_43, %c0_44] : memref<4x2x256xbf16, #tpu.memory_space<vmem>>, vector<1x2x256xbf16>
    %139 = vector.shape_cast %138 : vector<1x2x256xbf16> to vector<2x256xbf16>
    %140 = arith.extf %139 : vector<2x256xbf16> to vector<2x256xf32>
    %141 = arith.truncf %125 : vector<2x64xf32> to vector<2x64xbf16>
    %c0_45 = arith.constant 0 : index
    %c0_46 = arith.constant 0 : index
    %142 = vector.load %arg2[%c0_45, %c0_46] : memref<64x256xbf16, #tpu.memory_space<vmem>>, vector<64x256xbf16>
    %cst_47 = arith.constant dense<0.000000e+00> : vector<2x256xf32>
    %143 = tpu.matmul %141, %142, %cst_47 {dimension_numbers = #tpu.dot_dimension_numbers<[1], [0], [0], [1], [0, 0, 1, 1], [], []>} : vector<2x64xbf16>, vector<64x256xbf16>, vector<2x256xf32> -> vector<2x256xf32>
    %144 = arith.addf %140, %143 : vector<2x256xf32>
    %145 = vector.extract_strided_slice %144 {offsets = [0, 0], sizes = [2, 64], strides = [1, 1]} : vector<2x256xf32> to vector<2x64xf32>
    %146 = arith.negf %145 : vector<2x64xf32>
    %147 = math.exp %146 : vector<2x64xf32>
    %cst_48 = arith.constant 1.000000e+00 : f32
    %148 = vector.broadcast %cst_48 : f32 to vector<2x64xf32>
    %149 = arith.addf %148, %147 : vector<2x64xf32>
    %150 = arith.divf %148, %149 : vector<2x64xf32>
    %151 = vector.extract_strided_slice %144 {offsets = [0, 64], sizes = [2, 64], strides = [1, 1]} : vector<2x256xf32> to vector<2x64xf32>
    %152 = arith.negf %151 : vector<2x64xf32>
    %153 = math.exp %152 : vector<2x64xf32>
    %cst_49 = arith.constant 1.000000e+00 : f32
    %154 = vector.broadcast %cst_49 : f32 to vector<2x64xf32>
    %155 = arith.addf %154, %153 : vector<2x64xf32>
    %156 = arith.divf %154, %155 : vector<2x64xf32>
    %157 = vector.extract_strided_slice %144 {offsets = [0, 128], sizes = [2, 64], strides = [1, 1]} : vector<2x256xf32> to vector<2x64xf32>
    %158 = math.tanh %157 : vector<2x64xf32>
    %159 = vector.extract_strided_slice %144 {offsets = [0, 192], sizes = [2, 64], strides = [1, 1]} : vector<2x256xf32> to vector<2x64xf32>
    %160 = arith.negf %159 : vector<2x64xf32>
    %161 = math.exp %160 : vector<2x64xf32>
    %cst_50 = arith.constant 1.000000e+00 : f32
    %162 = vector.broadcast %cst_50 : f32 to vector<2x64xf32>
    %163 = arith.addf %162, %161 : vector<2x64xf32>
    %164 = arith.divf %162, %163 : vector<2x64xf32>
    %165 = arith.mulf %156, %123 : vector<2x64xf32>
    %166 = arith.mulf %150, %158 : vector<2x64xf32>
    %167 = arith.addf %165, %166 : vector<2x64xf32>
    %168 = math.tanh %167 : vector<2x64xf32>
    %169 = arith.mulf %164, %168 : vector<2x64xf32>
    %170 = arith.truncf %169 : vector<2x64xf32> to vector<2x64xbf16>
    %171 = arith.index_cast %c3_i32 : i32 to index
    %c0_51 = arith.constant 0 : index
    %c0_52 = arith.constant 0 : index
    %172 = vector.load %arg3[%171, %c0_51, %c0_52] : memref<4x2x64xbf16, #tpu.memory_space<vmem>>, vector<1x2x64xbf16>
    %173 = vector.shape_cast %172 : vector<1x2x64xbf16> to vector<2x64xbf16>
    %174 = vector.shape_cast %170 : vector<2x64xbf16> to vector<1x2x64xbf16>
    tpu.vector_store %arg3[%171, %c0_51, %c0_52], %174 {strides = array<i32>} : memref<4x2x64xbf16, #tpu.memory_space<vmem>>, vector<1x2x64xbf16>,
    %cst_53 = arith.constant dense<0.000000e+00> : vector<64xf32>
    %175 = vector.multi_reduction <add>, %169, %cst_53 [0] : vector<2x64xf32> to vector<64xf32>
    %176 = vector.shape_cast %175 : vector<64xf32> to vector<1x64xf32>
    %c0_54 = arith.constant 0 : index
    %177 = arith.index_cast %c3_i32 : i32 to index
    %c0_55 = arith.constant 0 : index
    %178 = vector.load %arg4[%c0_54, %177, %c0_55] : memref<1x4x64xf32, #tpu.memory_space<vmem>>, vector<1x1x64xf32>
    %179 = vector.shape_cast %178 : vector<1x1x64xf32> to vector<1x64xf32>
    %180 = vector.shape_cast %176 : vector<1x64xf32> to vector<1x1x64xf32>
    tpu.vector_store %arg4[%c0_54, %177, %c0_55], %180 {strides = array<i32>} : memref<1x4x64xf32, #tpu.memory_space<vmem>>, vector<1x1x64xf32>,
    %c4_i32 = arith.constant 4 : i32
    %c0_56 = arith.constant 0 : index
    %c0_57 = arith.constant 0 : index
    %181 = vector.load %arg5[%c0_56, %c0_57] : memref<2x64xf32, #tpu.memory_space<vmem>>, vector<2x64xf32>
    tpu.vector_store %arg5[%c0_56, %c0_57], %169 {strides = array<i32>} : memref<2x64xf32, #tpu.memory_space<vmem>>, vector<2x64xf32>,
    %c0_58 = arith.constant 0 : index
    %c0_59 = arith.constant 0 : index
    %182 = vector.load %arg6[%c0_58, %c0_59] : memref<2x64xf32, #tpu.memory_space<vmem>>, vector<2x64xf32>
    tpu.vector_store %arg6[%c0_58, %c0_59], %167 {strides = array<i32>} : memref<2x64xf32, #tpu.memory_space<vmem>>, vector<2x64xf32>,
    return
  }
  func.func @transform_0(%arg0: i32) -> (i32, i32, i32) {
    %c0_i32 = arith.constant 0 : i32
    %c0_i32_0 = arith.constant 0 : i32
    %c0_i32_1 = arith.constant 0 : i32
    return %arg0, %c0_i32, %c0_i32_0 : i32, i32, i32
  }
  func.func @transform_1(%arg0: i32) -> (i32, i32) {
    %c0_i32 = arith.constant 0 : i32
    %c0_i32_0 = arith.constant 0 : i32
    %c0_i32_1 = arith.constant 0 : i32
    return %c0_i32, %c0_i32_0 : i32, i32
  }
  func.func @transform_2(%arg0: i32) -> (i32, i32, i32) {
    %c0_i32 = arith.constant 0 : i32
    %c0_i32_0 = arith.constant 0 : i32
    %c0_i32_1 = arith.constant 0 : i32
    return %arg0, %c0_i32, %c0_i32_0 : i32, i32, i32
  }
  func.func @transform_3(%arg0: i32) -> (i32, i32, i32) {
    %c0_i32 = arith.constant 0 : i32
    %c0_i32_0 = arith.constant 0 : i32
    %c0_i32_1 = arith.constant 0 : i32
    return %arg0, %c0_i32, %c0_i32_0 : i32, i32, i32
  }
}

module attributes {stable_mosaic.version = 11 : i64} {
  func.func @_bilstm_chunk_kernel(%arg0: i32, %arg1: memref<4x2x256xbf16, #tpu.memory_space<vmem>>, %arg2: memref<64x256xbf16, #tpu.memory_space<vmem>>, %arg3: memref<1x4x64xf32, #tpu.memory_space<vmem>>, %arg4: memref<2x64xf32, #tpu.memory_space<vmem>>, %arg5: memref<2x64xf32, #tpu.memory_space<vmem>>) attributes {dimension_semantics = [#tpu.dimension_semantics<arbitrary>], iteration_bounds = array<i64: 2>, scalar_prefetch = 0 : i64, scratch_operands = 2 : i64, tpu.core_type = #tpu.core_type<tc>, window_params = [{transform_indices = @transform_0, window_bounds = array<i64: 4, 2, 256>}, {pipeline_mode = #tpu.pipeline_mode<synchronous>, transform_indices = @transform_1, window_bounds = array<i64: 64, 256>}, {transform_indices = @transform_2, window_bounds = array<i64: 1, 4, 64>}]} {
    %c0_i32 = arith.constant 0 : i32
    %0 = arith.cmpi eq, %arg0, %c0_i32 : i32
    %1 = arith.extui %0 : i1 to i32
    %c0_i32_0 = arith.constant 0 : i32
    %2 = arith.cmpi ne, %1, %c0_i32_0 : i32
    scf.if %2 {
      %cst_52 = arith.constant 0.000000e+00 : f32
      %163 = vector.broadcast %cst_52 : f32 to vector<2x64xf32>
      %c0_53 = arith.constant 0 : index
      %c0_54 = arith.constant 0 : index
      %164 = vector.load %arg4[%c0_53, %c0_54] : memref<2x64xf32, #tpu.memory_space<vmem>>, vector<2x64xf32>
      tpu.vector_store %arg4[%c0_53, %c0_54], %163 {strides = array<i32>} : memref<2x64xf32, #tpu.memory_space<vmem>>, vector<2x64xf32>,
      %cst_55 = arith.constant 0.000000e+00 : f32
      %165 = vector.broadcast %cst_55 : f32 to vector<2x64xf32>
      %c0_56 = arith.constant 0 : index
      %c0_57 = arith.constant 0 : index
      %166 = vector.load %arg5[%c0_56, %c0_57] : memref<2x64xf32, #tpu.memory_space<vmem>>, vector<2x64xf32>
      tpu.vector_store %arg5[%c0_56, %c0_57], %165 {strides = array<i32>} : memref<2x64xf32, #tpu.memory_space<vmem>>, vector<2x64xf32>,
    } else {
    }
    %c0 = arith.constant 0 : index
    %c0_1 = arith.constant 0 : index
    %3 = vector.load %arg4[%c0, %c0_1] : memref<2x64xf32, #tpu.memory_space<vmem>>, vector<2x64xf32>
    %c0_2 = arith.constant 0 : index
    %c0_3 = arith.constant 0 : index
    %4 = vector.load %arg5[%c0_2, %c0_3] : memref<2x64xf32, #tpu.memory_space<vmem>>, vector<2x64xf32>
    %c0_i32_4 = arith.constant 0 : i32
    %5 = arith.index_cast %c0_i32_4 : i32 to index
    %c0_5 = arith.constant 0 : index
    %c0_6 = arith.constant 0 : index
    %6 = vector.load %arg1[%5, %c0_5, %c0_6] : memref<4x2x256xbf16, #tpu.memory_space<vmem>>, vector<1x2x256xbf16>
    %7 = vector.shape_cast %6 : vector<1x2x256xbf16> to vector<2x256xbf16>
    %8 = arith.extf %7 : vector<2x256xbf16> to vector<2x256xf32>
    %9 = arith.truncf %3 : vector<2x64xf32> to vector<2x64xbf16>
    %c0_7 = arith.constant 0 : index
    %c0_8 = arith.constant 0 : index
    %10 = vector.load %arg2[%c0_7, %c0_8] : memref<64x256xbf16, #tpu.memory_space<vmem>>, vector<64x256xbf16>
    %cst = arith.constant dense<0.000000e+00> : vector<2x256xf32>
    %11 = tpu.matmul %9, %10, %cst {dimension_numbers = #tpu.dot_dimension_numbers<[1], [0], [0], [1], [0, 0, 1, 1], [], []>} : vector<2x64xbf16>, vector<64x256xbf16>, vector<2x256xf32> -> vector<2x256xf32>
    %12 = arith.addf %8, %11 : vector<2x256xf32>
    %13 = vector.extract_strided_slice %12 {offsets = [0, 0], sizes = [2, 64], strides = [1, 1]} : vector<2x256xf32> to vector<2x64xf32>
    %14 = arith.negf %13 : vector<2x64xf32>
    %15 = math.exp %14 : vector<2x64xf32>
    %cst_9 = arith.constant 1.000000e+00 : f32
    %16 = vector.broadcast %cst_9 : f32 to vector<2x64xf32>
    %17 = arith.addf %16, %15 : vector<2x64xf32>
    %18 = arith.divf %16, %17 : vector<2x64xf32>
    %19 = vector.extract_strided_slice %12 {offsets = [0, 64], sizes = [2, 64], strides = [1, 1]} : vector<2x256xf32> to vector<2x64xf32>
    %20 = arith.negf %19 : vector<2x64xf32>
    %21 = math.exp %20 : vector<2x64xf32>
    %cst_10 = arith.constant 1.000000e+00 : f32
    %22 = vector.broadcast %cst_10 : f32 to vector<2x64xf32>
    %23 = arith.addf %22, %21 : vector<2x64xf32>
    %24 = arith.divf %22, %23 : vector<2x64xf32>
    %25 = vector.extract_strided_slice %12 {offsets = [0, 128], sizes = [2, 64], strides = [1, 1]} : vector<2x256xf32> to vector<2x64xf32>
    %26 = math.tanh %25 : vector<2x64xf32>
    %27 = vector.extract_strided_slice %12 {offsets = [0, 192], sizes = [2, 64], strides = [1, 1]} : vector<2x256xf32> to vector<2x64xf32>
    %28 = arith.negf %27 : vector<2x64xf32>
    %29 = math.exp %28 : vector<2x64xf32>
    %cst_11 = arith.constant 1.000000e+00 : f32
    %30 = vector.broadcast %cst_11 : f32 to vector<2x64xf32>
    %31 = arith.addf %30, %29 : vector<2x64xf32>
    %32 = arith.divf %30, %31 : vector<2x64xf32>
    %33 = arith.mulf %24, %4 : vector<2x64xf32>
    %34 = arith.mulf %18, %26 : vector<2x64xf32>
    %35 = arith.addf %33, %34 : vector<2x64xf32>
    %36 = math.tanh %35 : vector<2x64xf32>
    %37 = arith.mulf %32, %36 : vector<2x64xf32>
    %cst_12 = arith.constant dense<0.000000e+00> : vector<64xf32>
    %38 = vector.multi_reduction <add>, %37, %cst_12 [0] : vector<2x64xf32> to vector<64xf32>
    %39 = vector.shape_cast %38 : vector<64xf32> to vector<1x64xf32>
    %c0_13 = arith.constant 0 : index
    %40 = arith.index_cast %c0_i32_4 : i32 to index
    %c0_14 = arith.constant 0 : index
    %41 = vector.load %arg3[%c0_13, %40, %c0_14] : memref<1x4x64xf32, #tpu.memory_space<vmem>>, vector<1x1x64xf32>
    %42 = vector.shape_cast %41 : vector<1x1x64xf32> to vector<1x64xf32>
    %43 = vector.shape_cast %39 : vector<1x64xf32> to vector<1x1x64xf32>
    tpu.vector_store %arg3[%c0_13, %40, %c0_14], %43 {strides = array<i32>} : memref<1x4x64xf32, #tpu.memory_space<vmem>>, vector<1x1x64xf32>,
    %c1_i32 = arith.constant 1 : i32
    %44 = arith.index_cast %c1_i32 : i32 to index
    %c0_15 = arith.constant 0 : index
    %c0_16 = arith.constant 0 : index
    %45 = vector.load %arg1[%44, %c0_15, %c0_16] : memref<4x2x256xbf16, #tpu.memory_space<vmem>>, vector<1x2x256xbf16>
    %46 = vector.shape_cast %45 : vector<1x2x256xbf16> to vector<2x256xbf16>
    %47 = arith.extf %46 : vector<2x256xbf16> to vector<2x256xf32>
    %48 = arith.truncf %37 : vector<2x64xf32> to vector<2x64xbf16>
    %c0_17 = arith.constant 0 : index
    %c0_18 = arith.constant 0 : index
    %49 = vector.load %arg2[%c0_17, %c0_18] : memref<64x256xbf16, #tpu.memory_space<vmem>>, vector<64x256xbf16>
    %cst_19 = arith.constant dense<0.000000e+00> : vector<2x256xf32>
    %50 = tpu.matmul %48, %49, %cst_19 {dimension_numbers = #tpu.dot_dimension_numbers<[1], [0], [0], [1], [0, 0, 1, 1], [], []>} : vector<2x64xbf16>, vector<64x256xbf16>, vector<2x256xf32> -> vector<2x256xf32>
    %51 = arith.addf %47, %50 : vector<2x256xf32>
    %52 = vector.extract_strided_slice %51 {offsets = [0, 0], sizes = [2, 64], strides = [1, 1]} : vector<2x256xf32> to vector<2x64xf32>
    %53 = arith.negf %52 : vector<2x64xf32>
    %54 = math.exp %53 : vector<2x64xf32>
    %cst_20 = arith.constant 1.000000e+00 : f32
    %55 = vector.broadcast %cst_20 : f32 to vector<2x64xf32>
    %56 = arith.addf %55, %54 : vector<2x64xf32>
    %57 = arith.divf %55, %56 : vector<2x64xf32>
    %58 = vector.extract_strided_slice %51 {offsets = [0, 64], sizes = [2, 64], strides = [1, 1]} : vector<2x256xf32> to vector<2x64xf32>
    %59 = arith.negf %58 : vector<2x64xf32>
    %60 = math.exp %59 : vector<2x64xf32>
    %cst_21 = arith.constant 1.000000e+00 : f32
    %61 = vector.broadcast %cst_21 : f32 to vector<2x64xf32>
    %62 = arith.addf %61, %60 : vector<2x64xf32>
    %63 = arith.divf %61, %62 : vector<2x64xf32>
    %64 = vector.extract_strided_slice %51 {offsets = [0, 128], sizes = [2, 64], strides = [1, 1]} : vector<2x256xf32> to vector<2x64xf32>
    %65 = math.tanh %64 : vector<2x64xf32>
    %66 = vector.extract_strided_slice %51 {offsets = [0, 192], sizes = [2, 64], strides = [1, 1]} : vector<2x256xf32> to vector<2x64xf32>
    %67 = arith.negf %66 : vector<2x64xf32>
    %68 = math.exp %67 : vector<2x64xf32>
    %cst_22 = arith.constant 1.000000e+00 : f32
    %69 = vector.broadcast %cst_22 : f32 to vector<2x64xf32>
    %70 = arith.addf %69, %68 : vector<2x64xf32>
    %71 = arith.divf %69, %70 : vector<2x64xf32>
    %72 = arith.mulf %63, %35 : vector<2x64xf32>
    %73 = arith.mulf %57, %65 : vector<2x64xf32>
    %74 = arith.addf %72, %73 : vector<2x64xf32>
    %75 = math.tanh %74 : vector<2x64xf32>
    %76 = arith.mulf %71, %75 : vector<2x64xf32>
    %cst_23 = arith.constant dense<0.000000e+00> : vector<64xf32>
    %77 = vector.multi_reduction <add>, %76, %cst_23 [0] : vector<2x64xf32> to vector<64xf32>
    %78 = vector.shape_cast %77 : vector<64xf32> to vector<1x64xf32>
    %c0_24 = arith.constant 0 : index
    %79 = arith.index_cast %c1_i32 : i32 to index
    %c0_25 = arith.constant 0 : index
    %80 = vector.load %arg3[%c0_24, %79, %c0_25] : memref<1x4x64xf32, #tpu.memory_space<vmem>>, vector<1x1x64xf32>
    %81 = vector.shape_cast %80 : vector<1x1x64xf32> to vector<1x64xf32>
    %82 = vector.shape_cast %78 : vector<1x64xf32> to vector<1x1x64xf32>
    tpu.vector_store %arg3[%c0_24, %79, %c0_25], %82 {strides = array<i32>} : memref<1x4x64xf32, #tpu.memory_space<vmem>>, vector<1x1x64xf32>,
    %c2_i32 = arith.constant 2 : i32
    %83 = arith.index_cast %c2_i32 : i32 to index
    %c0_26 = arith.constant 0 : index
    %c0_27 = arith.constant 0 : index
    %84 = vector.load %arg1[%83, %c0_26, %c0_27] : memref<4x2x256xbf16, #tpu.memory_space<vmem>>, vector<1x2x256xbf16>
    %85 = vector.shape_cast %84 : vector<1x2x256xbf16> to vector<2x256xbf16>
    %86 = arith.extf %85 : vector<2x256xbf16> to vector<2x256xf32>
    %87 = arith.truncf %76 : vector<2x64xf32> to vector<2x64xbf16>
    %c0_28 = arith.constant 0 : index
    %c0_29 = arith.constant 0 : index
    %88 = vector.load %arg2[%c0_28, %c0_29] : memref<64x256xbf16, #tpu.memory_space<vmem>>, vector<64x256xbf16>
    %cst_30 = arith.constant dense<0.000000e+00> : vector<2x256xf32>
    %89 = tpu.matmul %87, %88, %cst_30 {dimension_numbers = #tpu.dot_dimension_numbers<[1], [0], [0], [1], [0, 0, 1, 1], [], []>} : vector<2x64xbf16>, vector<64x256xbf16>, vector<2x256xf32> -> vector<2x256xf32>
    %90 = arith.addf %86, %89 : vector<2x256xf32>
    %91 = vector.extract_strided_slice %90 {offsets = [0, 0], sizes = [2, 64], strides = [1, 1]} : vector<2x256xf32> to vector<2x64xf32>
    %92 = arith.negf %91 : vector<2x64xf32>
    %93 = math.exp %92 : vector<2x64xf32>
    %cst_31 = arith.constant 1.000000e+00 : f32
    %94 = vector.broadcast %cst_31 : f32 to vector<2x64xf32>
    %95 = arith.addf %94, %93 : vector<2x64xf32>
    %96 = arith.divf %94, %95 : vector<2x64xf32>
    %97 = vector.extract_strided_slice %90 {offsets = [0, 64], sizes = [2, 64], strides = [1, 1]} : vector<2x256xf32> to vector<2x64xf32>
    %98 = arith.negf %97 : vector<2x64xf32>
    %99 = math.exp %98 : vector<2x64xf32>
    %cst_32 = arith.constant 1.000000e+00 : f32
    %100 = vector.broadcast %cst_32 : f32 to vector<2x64xf32>
    %101 = arith.addf %100, %99 : vector<2x64xf32>
    %102 = arith.divf %100, %101 : vector<2x64xf32>
    %103 = vector.extract_strided_slice %90 {offsets = [0, 128], sizes = [2, 64], strides = [1, 1]} : vector<2x256xf32> to vector<2x64xf32>
    %104 = math.tanh %103 : vector<2x64xf32>
    %105 = vector.extract_strided_slice %90 {offsets = [0, 192], sizes = [2, 64], strides = [1, 1]} : vector<2x256xf32> to vector<2x64xf32>
    %106 = arith.negf %105 : vector<2x64xf32>
    %107 = math.exp %106 : vector<2x64xf32>
    %cst_33 = arith.constant 1.000000e+00 : f32
    %108 = vector.broadcast %cst_33 : f32 to vector<2x64xf32>
    %109 = arith.addf %108, %107 : vector<2x64xf32>
    %110 = arith.divf %108, %109 : vector<2x64xf32>
    %111 = arith.mulf %102, %74 : vector<2x64xf32>
    %112 = arith.mulf %96, %104 : vector<2x64xf32>
    %113 = arith.addf %111, %112 : vector<2x64xf32>
    %114 = math.tanh %113 : vector<2x64xf32>
    %115 = arith.mulf %110, %114 : vector<2x64xf32>
    %cst_34 = arith.constant dense<0.000000e+00> : vector<64xf32>
    %116 = vector.multi_reduction <add>, %115, %cst_34 [0] : vector<2x64xf32> to vector<64xf32>
    %117 = vector.shape_cast %116 : vector<64xf32> to vector<1x64xf32>
    %c0_35 = arith.constant 0 : index
    %118 = arith.index_cast %c2_i32 : i32 to index
    %c0_36 = arith.constant 0 : index
    %119 = vector.load %arg3[%c0_35, %118, %c0_36] : memref<1x4x64xf32, #tpu.memory_space<vmem>>, vector<1x1x64xf32>
    %120 = vector.shape_cast %119 : vector<1x1x64xf32> to vector<1x64xf32>
    %121 = vector.shape_cast %117 : vector<1x64xf32> to vector<1x1x64xf32>
    tpu.vector_store %arg3[%c0_35, %118, %c0_36], %121 {strides = array<i32>} : memref<1x4x64xf32, #tpu.memory_space<vmem>>, vector<1x1x64xf32>,
    %c3_i32 = arith.constant 3 : i32
    %122 = arith.index_cast %c3_i32 : i32 to index
    %c0_37 = arith.constant 0 : index
    %c0_38 = arith.constant 0 : index
    %123 = vector.load %arg1[%122, %c0_37, %c0_38] : memref<4x2x256xbf16, #tpu.memory_space<vmem>>, vector<1x2x256xbf16>
    %124 = vector.shape_cast %123 : vector<1x2x256xbf16> to vector<2x256xbf16>
    %125 = arith.extf %124 : vector<2x256xbf16> to vector<2x256xf32>
    %126 = arith.truncf %115 : vector<2x64xf32> to vector<2x64xbf16>
    %c0_39 = arith.constant 0 : index
    %c0_40 = arith.constant 0 : index
    %127 = vector.load %arg2[%c0_39, %c0_40] : memref<64x256xbf16, #tpu.memory_space<vmem>>, vector<64x256xbf16>
    %cst_41 = arith.constant dense<0.000000e+00> : vector<2x256xf32>
    %128 = tpu.matmul %126, %127, %cst_41 {dimension_numbers = #tpu.dot_dimension_numbers<[1], [0], [0], [1], [0, 0, 1, 1], [], []>} : vector<2x64xbf16>, vector<64x256xbf16>, vector<2x256xf32> -> vector<2x256xf32>
    %129 = arith.addf %125, %128 : vector<2x256xf32>
    %130 = vector.extract_strided_slice %129 {offsets = [0, 0], sizes = [2, 64], strides = [1, 1]} : vector<2x256xf32> to vector<2x64xf32>
    %131 = arith.negf %130 : vector<2x64xf32>
    %132 = math.exp %131 : vector<2x64xf32>
    %cst_42 = arith.constant 1.000000e+00 : f32
    %133 = vector.broadcast %cst_42 : f32 to vector<2x64xf32>
    %134 = arith.addf %133, %132 : vector<2x64xf32>
    %135 = arith.divf %133, %134 : vector<2x64xf32>
    %136 = vector.extract_strided_slice %129 {offsets = [0, 64], sizes = [2, 64], strides = [1, 1]} : vector<2x256xf32> to vector<2x64xf32>
    %137 = arith.negf %136 : vector<2x64xf32>
    %138 = math.exp %137 : vector<2x64xf32>
    %cst_43 = arith.constant 1.000000e+00 : f32
    %139 = vector.broadcast %cst_43 : f32 to vector<2x64xf32>
    %140 = arith.addf %139, %138 : vector<2x64xf32>
    %141 = arith.divf %139, %140 : vector<2x64xf32>
    %142 = vector.extract_strided_slice %129 {offsets = [0, 128], sizes = [2, 64], strides = [1, 1]} : vector<2x256xf32> to vector<2x64xf32>
    %143 = math.tanh %142 : vector<2x64xf32>
    %144 = vector.extract_strided_slice %129 {offsets = [0, 192], sizes = [2, 64], strides = [1, 1]} : vector<2x256xf32> to vector<2x64xf32>
    %145 = arith.negf %144 : vector<2x64xf32>
    %146 = math.exp %145 : vector<2x64xf32>
    %cst_44 = arith.constant 1.000000e+00 : f32
    %147 = vector.broadcast %cst_44 : f32 to vector<2x64xf32>
    %148 = arith.addf %147, %146 : vector<2x64xf32>
    %149 = arith.divf %147, %148 : vector<2x64xf32>
    %150 = arith.mulf %141, %113 : vector<2x64xf32>
    %151 = arith.mulf %135, %143 : vector<2x64xf32>
    %152 = arith.addf %150, %151 : vector<2x64xf32>
    %153 = math.tanh %152 : vector<2x64xf32>
    %154 = arith.mulf %149, %153 : vector<2x64xf32>
    %cst_45 = arith.constant dense<0.000000e+00> : vector<64xf32>
    %155 = vector.multi_reduction <add>, %154, %cst_45 [0] : vector<2x64xf32> to vector<64xf32>
    %156 = vector.shape_cast %155 : vector<64xf32> to vector<1x64xf32>
    %c0_46 = arith.constant 0 : index
    %157 = arith.index_cast %c3_i32 : i32 to index
    %c0_47 = arith.constant 0 : index
    %158 = vector.load %arg3[%c0_46, %157, %c0_47] : memref<1x4x64xf32, #tpu.memory_space<vmem>>, vector<1x1x64xf32>
    %159 = vector.shape_cast %158 : vector<1x1x64xf32> to vector<1x64xf32>
    %160 = vector.shape_cast %156 : vector<1x64xf32> to vector<1x1x64xf32>
    tpu.vector_store %arg3[%c0_46, %157, %c0_47], %160 {strides = array<i32>} : memref<1x4x64xf32, #tpu.memory_space<vmem>>, vector<1x1x64xf32>,
    %c4_i32 = arith.constant 4 : i32
    %c0_48 = arith.constant 0 : index
    %c0_49 = arith.constant 0 : index
    %161 = vector.load %arg4[%c0_48, %c0_49] : memref<2x64xf32, #tpu.memory_space<vmem>>, vector<2x64xf32>
    tpu.vector_store %arg4[%c0_48, %c0_49], %154 {strides = array<i32>} : memref<2x64xf32, #tpu.memory_space<vmem>>, vector<2x64xf32>,
    %c0_50 = arith.constant 0 : index
    %c0_51 = arith.constant 0 : index
    %162 = vector.load %arg5[%c0_50, %c0_51] : memref<2x64xf32, #tpu.memory_space<vmem>>, vector<2x64xf32>
    tpu.vector_store %arg5[%c0_50, %c0_51], %152 {strides = array<i32>} : memref<2x64xf32, #tpu.memory_space<vmem>>, vector<2x64xf32>,
    return
  }
  func.func @transform_0(%arg0: i32) -> (i32, i32, i32) {
    %c0_i32 = arith.constant 0 : i32
    %c0_i32_0 = arith.constant 0 : i32
    %c0_i32_1 = arith.constant 0 : i32
    return %arg0, %c0_i32, %c0_i32_0 : i32, i32, i32
  }
  func.func @transform_1(%arg0: i32) -> (i32, i32) {
    %c0_i32 = arith.constant 0 : i32
    %c0_i32_0 = arith.constant 0 : i32
    %c0_i32_1 = arith.constant 0 : i32
    return %c0_i32, %c0_i32_0 : i32, i32
  }
  func.func @transform_2(%arg0: i32) -> (i32, i32, i32) {
    %c0_i32 = arith.constant 0 : i32
    %c0_i32_0 = arith.constant 0 : i32
    %c0_i32_1 = arith.constant 0 : i32
    return %arg0, %c0_i32, %c0_i32_0 : i32, i32, i32
  }
}

</mosaic_0001>

<llo_original>
// kernel: batch_descriptor_forward.2
$region0: #{batch_descriptor_forward.2}
  #allocation0 [shape = 'u32[]', space=smem, size = 0x4, offset = 0x4, fixed_abs, tag = 'smem constant byte address 0x4 - core index']
  #allocation1 [shape = 'u32[144,128]{1,0:T(1,128)}', space=vmem, size = 0x12000, scoped, tag = 'internal scratch']
  #allocation2 [shape = 'f32[2,64]{1,0:T(2,128)}', space=vmem, size = 0x400, scoped, tag = 'scratch operand']
  #allocation3 [shape = 'f32[2,64]{1,0:T(2,128)}', space=vmem, size = 0x400, scoped, tag = 'scratch operand']
  %s0 = inlined_call_operand.vmem [shape: bf16[8,2,256], index: 0, kind: input, shape index: {}]
  %s1 = inlined_call_operand.vmem [shape: bf16[64,256], index: 1, kind: input, shape index: {}]
  %s2 = inlined_call_operand.vmem [shape: bf16[8,2,64], index: 2, kind: output, shape index: {0}]
  %s3 = inlined_call_operand.hbm [shape: f32[2,4,64], index: 3, kind: output, shape index: {1}]
  %4 = xla_tuple %s2, %s3
  %s5 = sld [smem:[#allocation0]]
  $region53: #{batch_descriptor_forward.2} parent=0
    _
  %s7 = ssub.s32 1, %s5
  %s8 = scalar_select 0, %s7, %s5
  $region1: #{batch_descriptor_forward.2} parent=0
    #allocation4 [shape = 'u8[4096]{0}', space=vmem, size = 0x1000, scoped, tag = 'output window, operand 1']
    #allocation5 [shape = 's32[2]{0}', space=sflag, size = 0x8, scoped, tag = 'scoped memory for batch_descriptor_forward.2']
    %9 = vsyncpa [#allocation5], 0
    %s10 = scalar_lea.sflag [#allocation5], 1
    %11 = vsyncpa %s10, 0
    loop: start=0, step=1, limit=4
    $region2: #{batch_descriptor_forward.2} parent=1 // loop_pre_header
      _
    $region3: #{batch_descriptor_forward.2} parent=1 // loop_header
      %s13 = sphi 0, %s17
      %p14 = scmp.ge.s32.totalorder %s13, 4
      %s23 = sphi 0, %s25
      %s26 = sphi 0, %s23
      %s27 = sphi 0, %s26
      %s43 = sphi 0, %s27
      %s47 = sphi 0, %s47
      %s49 = sphi 0, %s47
      %s50 = sphi 0, %s49
      %s64 = sphi 0, %s50
      %s70 = sphi 0, %s72
      %s73 = sphi 0, %s70
      %s74 = sphi 0, %s73
      %s90 = sphi 0, %s74
      %s96 = sphi 0, %s98
      %s99 = sphi 0, %s96
      %s100 = sphi 0, %s99
      %s116 = sphi 0, %s100
    $region4: #{batch_descriptor_forward.2} parent=1 // loop_header_branch
      %16 = sbr.rel (%p14) target = $region8
    $region5: #{batch_descriptor_forward.2} parent=1 // loop_body
      %s18 = ssub.s32 %s13, 1
      %s19 = ssub.s32 %s13, 2
      %s20 = sadd.s32 %s13, 1
      %s21 = ssub.s32 %s13, %s20
      %p22 = scmp.eq.s32.totalorder %s21, 0
      %s24 = sadd.s32 %s23, 1
      %s25 = scalar_select %p22, %s23, %s24
      %p28 = pneg %p22
      %p29 = scmp.eq.s32.totalorder %s13, 1
      %p30 = por %p28, %p29
      %p31 = scmp.ne.s32.totalorder %s23, %s26
      %p32 = scmp.eq.s32.totalorder %s13, 0
      %p33 = por %p31, %p32
      %p34 = scmp.ne.s32.totalorder %s23, %s26
      %p35 = scmp.eq.s32.totalorder %s18, 1
      %p36 = por %p34, %p35
      %p37 = scmp.ne.s32.totalorder %s26, %s27
      %p38 = scmp.eq.s32.totalorder %s18, 0
      %p39 = por %p37, %p38
      %p40 = scmp.ne.s32.totalorder %s26, %s27
      %p41 = scmp.eq.s32.totalorder %s19, 1
      %p42 = por %p40, %p41
      %p44 = scmp.ne.s32.totalorder %s27, %s43
      %p45 = scmp.eq.s32.totalorder %s19, 0
      %p46 = por %p44, %p45
      %s48 = sadd.s32 %s47, 1
      %p51 = scmp.eq.s32.totalorder %s13, 1
      %p52 = scmp.ne.s32.totalorder %s47, %s49
      %p53 = scmp.eq.s32.totalorder %s13, 0
      %p54 = por %p52, %p53
      %p55 = scmp.ne.s32.totalorder %s47, %s49
      %p56 = scmp.eq.s32.totalorder %s18, 1
      %p57 = por %p55, %p56
      %p58 = scmp.ne.s32.totalorder %s49, %s50
      %p59 = scmp.eq.s32.totalorder %s18, 0
      %p60 = por %p58, %p59
      %p61 = scmp.ne.s32.totalorder %s49, %s50
      %p62 = scmp.eq.s32.totalorder %s19, 1
      %p63 = por %p61, %p62
      %p65 = scmp.ne.s32.totalorder %s50, %s64
      %p66 = scmp.eq.s32.totalorder %s19, 0
      %p67 = por %p65, %p66
      %s68 = ssub.s32 %s13, %s20
      %p69 = scmp.eq.s32.totalorder %s68, 0
      %s71 = sadd.s32 %s70, 1
      %s72 = scalar_select %p69, %s70, %s71
      %p75 = pneg %p69
      %p76 = scmp.eq.s32.totalorder %s13, 1
      %p77 = por %p75, %p76
      %p78 = scmp.ne.s32.totalorder %s70, %s73
      %p79 = scmp.eq.s32.totalorder %s13, 0
      %p80 = por %p78, %p79
      %p81 = scmp.ne.s32.totalorder %s70, %s73
      %p82 = scmp.eq.s32.totalorder %s18, 1
      %p83 = por %p81, %p82
      %p84 = scmp.ne.s32.totalorder %s73, %s74
      %p85 = scmp.eq.s32.totalorder %s18, 0
      %p86 = por %p84, %p85
      %p87 = scmp.ne.s32.totalorder %s73, %s74
      %p88 = scmp.eq.s32.totalorder %s19, 1
      %p89 = por %p87, %p88
      %p91 = scmp.ne.s32.totalorder %s74, %s90
      %p92 = scmp.eq.s32.totalorder %s19, 0
      %p93 = por %p91, %p92
      %s94 = ssub.s32 %s13, %s20
      %p95 = scmp.eq.s32.totalorder %s94, 0
      %s97 = sadd.s32 %s96, 1
      %s98 = scalar_select %p95, %s96, %s97
      %p101 = pneg %p95
      %p102 = scmp.eq.s32.totalorder %s13, 1
      %p103 = por %p101, %p102
      %p104 = scmp.ne.s32.totalorder %s96, %s99
      %p105 = scmp.eq.s32.totalorder %s13, 0
      %p106 = por %p104, %p105
      %p107 = scmp.ne.s32.totalorder %s96, %s99
      %p108 = scmp.eq.s32.totalorder %s18, 1
      %p109 = por %p107, %p108
      %p110 = scmp.ne.s32.totalorder %s99, %s100
      %p111 = scmp.eq.s32.totalorder %s18, 0
      %p112 = por %p110, %p111
      %p113 = scmp.ne.s32.totalorder %s99, %s100
      %p114 = scmp.eq.s32.totalorder %s19, 1
      %p115 = por %p113, %p114
      %p117 = scmp.ne.s32.totalorder %s100, %s116
      %p118 = scmp.eq.s32.totalorder %s19, 0
      %p119 = por %p117, %p118
      %p120 = scmp.le.s32.totalorder 1, %s13
      %p121 = scmp.lt.s32.totalorder %s13, 3
      %p122 = pnand %p120, %p121
      %p123 = pneg %p122
      // Predicated region
      $region9: #{batch_descriptor_forward.2} parent=5 // pred_check
        _
      $region10: #{batch_descriptor_forward.2} parent=5 // pred_check_branch
        %125 = sbr.rel (%p122) target = $region12
      $region11: #{batch_descriptor_forward.2} parent=5 // pred_region
        %s126 = ssub.s32 %s13, 1
        // Predicated region
        $region13: #{batch_descriptor_forward.2} parent=11 // pred_check
          %p127 = pneg %p60
        $region14: #{batch_descriptor_forward.2} parent=11 // pred_check_branch
          %129 = sbr.rel (%p127) target = $region16
        $region15: #{batch_descriptor_forward.2} parent=11 // pred_region
          _
        $region16: #{batch_descriptor_forward.2} parent=11 // pred_fallthru
          _
      $region12: #{batch_descriptor_forward.2} parent=5 // pred_fallthru
        _
      %p130 = scmp.lt.s32.totalorder %s13, 2
      // Predicated region
      $region17: #{batch_descriptor_forward.2} parent=5 // pred_check
        %p131 = pneg %p130
      $region18: #{batch_descriptor_forward.2} parent=5 // pred_check_branch
        %133 = sbr.rel (%p131) target = $region20
      $region19: #{batch_descriptor_forward.2} parent=5 // pred_region
        // Predicated region
        $region21: #{batch_descriptor_forward.2} parent=19 // pred_check
          %p134 = pneg %p33
        $region22: #{batch_descriptor_forward.2} parent=19 // pred_check_branch
          %136 = sbr.rel (%p134) target = $region24
        $region23: #{batch_descriptor_forward.2} parent=19 // pred_region
          %s137 = smul.u32 4, %s13
          %p138 = scmp.lt.s32.totalorder %s137, 7
          %s139 = scalar_select %p138, %s137, 7
          %s140 = smul.addr %s139, 2
          %s141 = scalar_lea.vmem %s0, %s140
          %s142 = smul.u32 4, %s13
        $region24: #{batch_descriptor_forward.2} parent=19 // pred_fallthru
          _
      $region20: #{batch_descriptor_forward.2} parent=5 // pred_fallthru
        _
      %p143 = scmp.le.s32.totalorder 1, %s13
      %p144 = scmp.lt.s32.totalorder %s13, 3
      %p145 = pnand %p143, %p144
      %p146 = pneg %p145
      // Predicated region
      $region25: #{batch_descriptor_forward.2} parent=5 // pred_check
        _
      $region26: #{batch_descriptor_forward.2} parent=5 // pred_check_branch
        %148 = sbr.rel (%p145) target = $region28
      $region27: #{batch_descriptor_forward.2} parent=5 // pred_region
        %s149 = ssub.s32 %s13, 1
        %s150 = smul.u32 4, %s18
        %p151 = scmp.lt.s32.totalorder %s150, 7
        %s152 = scalar_select %p151, %s150, 7
        %s153 = smul.addr %s152, 2
        %s154 = scalar_lea.vmem %s0, %s153
        %p155 = pneg %p39
        %p156 = pneg %p36
        %p157 = pneg %p60
        %p158 = pneg %p57
        %p159 = pneg %p86
        %p160 = pneg %p83
        %s161 = smul.u32 4, %s18
        %p162 = scmp.lt.s32.totalorder %s161, 7
        %s163 = scalar_select %p162, %s161, 7
        %s164 = scalar_lea.vmem %s2, %s163
        %p165 = pneg %p112
        %p166 = pneg %p109
        %s167 = sand.u32 %s99, 1
        %s168 = scalar_lea.sflag [#allocation5], %s167
        %s169 = sand.u32 %s99, 1
        %s170 = smul.addr %s169, 4
        %s171 = scalar_lea.vmem [#allocation4], %s170
        %s172 = smul.u32 4, %s18
        %p173 = scmp.lt.s32.totalorder %s172, 7
        %s174 = scalar_select %p173, %s172, 7
        %s175 = smul.addr %s174, 2
        %s176 = scalar_lea.vmem %s0, %s175
        %s177 = smul.u32 4, %s18
        %s178 = smul.u32 4, %s18
        %p179 = scmp.lt.s32.totalorder %s178, 7
        %s180 = scalar_select %p179, %s178, 7
        %s181 = scalar_lea.vmem %s2, %s180
        %s182 = smul.u32 4, %s18
        %p184 = scmp.eq.s32.totalorder %s18, 0
        // Predicated region
        $region29: #{batch_descriptor_forward.2} parent=27 // pred_check
          %p185 = pneg %p184
        $region30: #{batch_descriptor_forward.2} parent=27 // pred_check_branch
          %187 = sbr.rel (%p185) target = $region32
        $region31: #{batch_descriptor_forward.2} parent=27 // pred_region
          %vm188 = vcmask 517120
          %189 = vst.msk [vmem:[#allocation2] sm:$0x3] %vm188, 0.0
          %190 = vst.msk [vmem:[#allocation3] sm:$0x3] %vm188, 0.0
        $region32: #{batch_descriptor_forward.2} parent=27 // pred_fallthru
          _
        %v191 = vld [vmem:[#allocation2] sm:$0x3]
        %v192 = vld [vmem:[#allocation3] sm:$0x3]
        %v193 = vld [vmem:[%s176] sm:$0x3]
        %v194 = vunpack.c.l.bf16 %v193
        %v195 = vpack.c.bf16 %v191, %v191
        %v196 = vld [vmem:[%s1] sm:$0xff]
        %v197 = vld [vmem:[%s1 + $0x8] sm:$0xff]
        %v198 = vld [vmem:[%s1 + $0x10] sm:$0xff]
        %v199 = vld [vmem:[%s1 + $0x18] sm:$0xff]
        %v200 = vld [vmem:[%s1 + $0x20] sm:$0xff]
        %v201 = vld [vmem:[%s1 + $0x28] sm:$0xff]
        %v202 = vld [vmem:[%s1 + $0x30] sm:$0xff]
        %v203 = vld [vmem:[%s1 + $0x38] sm:$0xff]
        %v212 = vunpack.c.l.b16 %v196
        %v213 = vunpack.c.h.b16 %v196
        %v214 = vunpack.c.l.b16 %v197
        %v215 = vunpack.c.h.b16 %v197
        %v216 = vunpack.c.l.b16 %v198
        %v217 = vunpack.c.h.b16 %v198
        %v218 = vunpack.c.l.b16 %v199
        %v219 = vunpack.c.h.b16 %v199
        %v220 = vunpack.c.l.b16 %v200
        %v221 = vunpack.c.h.b16 %v200
        %v222 = vunpack.c.l.b16 %v201
        %v223 = vunpack.c.h.b16 %v201
        %v224 = vunpack.c.l.b16 %v202
        %v225 = vunpack.c.h.b16 %v202
        %v226 = vunpack.c.l.b16 %v203
        %v227 = vunpack.c.h.b16 %v203
        %v228 = vpack.c.b16 %v214, %v212
        %v229 = vpack.c.b16 %v215, %v213
        %v230 = vpack.c.b16 %v218, %v216
        %v231 = vpack.c.b16 %v219, %v217
        %v232 = vpack.c.b16 %v222, %v220
        %v233 = vpack.c.b16 %v223, %v221
        %v234 = vpack.c.b16 %v226, %v224
        %v235 = vpack.c.b16 %v227, %v225
        %vm244 = vcmask 523264
        %v246 = vsel %vm244, %v195, 0
        %248 = vmatprep.subr.bf16.mxu0 %v229
        %249 = vmatpush1.bf16.msra.mxu0 %v228
        %250 = vmatprep.subr.bf16.mxu0 %v231
        %251 = vmatpush1.bf16.msra.mxu0 %v230
        %252 = vmatprep.subr.bf16.mxu0 %v233
        %253 = vmatpush1.bf16.msra.mxu0 %v232
        %254 = vmatprep.subr.bf16.mxu0 %v235
        %255 = vmatpush1.bf16.msra.mxu0 %v234
        %256 = vmatprep.subr.bf16.mxu0 0
        %257 = vmatpush1.bf16.msra.mxu0 0
        %258 = vmatprep.subr.bf16.mxu0 0
        %259 = vmatpush1.bf16.msra.mxu0 0
        %260 = vmatprep.subr.bf16.mxu0 0
        %261 = vmatpush1.bf16.msra.mxu0 0
        %262 = vmatprep.subr.bf16.mxu0 0
        %263 = vmatpush1.bf16.msra.mxu0 0
        %264 = vmatprep.subr.bf16.mxu0 0
        %265 = vmatpush1.bf16.msra.mxu0 0
        %266 = vmatprep.subr.bf16.mxu0 0
        %267 = vmatpush1.bf16.msra.mxu0 0
        %268 = vmatprep.subr.bf16.mxu0 0
        %269 = vmatpush1.bf16.msra.mxu0 0
        %270 = vmatprep.subr.bf16.mxu0 0
        %271 = vmatpush1.bf16.msra.mxu0 0
        %272 = vmatprep.subr.bf16.mxu0 0
        %273 = vmatpush1.bf16.msra.mxu0 0
        %274 = vmatprep.subr.bf16.mxu0 0
        %275 = vmatpush1.bf16.msra.mxu0 0
        %276 = vmatprep.subr.bf16.mxu0 0
        %277 = vmatpush1.bf16.msra.mxu0 0
        %278 = vmatprep.subr.bf16.mxu0 0
        %279 = vmatpush1.bf16.msra.mxu0 0
        %280 = vmatprep.mubr.bf16.mxu0 0
        %281 = vmatmul.mubr.bf16.gmra.mrb[0].mxu0 %v246
        %v282 = vpop.f32.mrb[0].mxu0
        %v283 = vadd.f32 0.0, %v282
        %v284 = vpop.f32.mrb[0].mxu0
        %v285 = vadd.f32 0.0, %v284
        %v286 = vpop.f32.mrb[0].mxu0
        %v287 = vpop.f32.mrb[0].mxu0
        %288 = vdwg.mxu0
        %v291 = vcombine.low %v283, %v285
        %v293 = vunpack.c.l.s4 1983009808
        %v294 = vunpack.c.0.s8 %v293
        %v295 = vlaneseq
        %v296 = vshrl.u32 %v295, 7
        %v297 = vsub.s32 %v294, %v296
        %v298 = vrot.slane %v291, %v297
        %v300 = vadd.f32 %v194, %v298
        %v301 = vxor.u32 %v300, 2147483648
        %v302 = vmul.f32 %v301, 1.442695
        %v303 = vpow.pop %v302
        %v304 = vadd.f32 %v303, 1.0
        %v305 = vrcp.pop %v304
        %v306 = vmul.f32 1.0, %v305
        %v308 = vrot.slane %v300, 2
        %v310 = vtanh.pop %v308
        %311 = vrot.lane.b32.xlu0 %v300, 64
        %v312 = vpop.permute.xlu0 %311
        %v313 = vrot.slane %v312, 2
        %v315 = vxor.u32 %v313, 2147483648
        %v316 = vmul.f32 %v315, 1.442695
        %v317 = vpow.pop %v316
        %v318 = vadd.f32 %v317, 1.0
        %v319 = vrcp.pop %v318
        %v320 = vmul.f32 1.0, %v319
        %v323 = vunpack.c.l.s4 1983009808
        %v324 = vunpack.c.0.s8 %v323
        %v325 = vlaneseq
        %v326 = vshrl.u32 %v325, 7
        %v327 = vsub.s32 %v324, %v326
        %v328 = vrot.slane %v192, %v327
        %329 = vrot.lane.b32.xlu0 %v328, 64
        %v330 = vpop.permute.xlu0 %329
        %v332 = vmul.f32 %v306, %v330
        %v333 = vmul.f32 %v306, %v310
        %335 = vrot.lane.b32.xlu0 %v333, 64
        %v336 = vpop.permute.xlu0 %335
        %v338 = vadd.f32 %v332, %v336
        %v339 = vtanh.pop %v338
        %341 = vrot.lane.b32.xlu0 %v339, 64
        %v342 = vpop.permute.xlu0 %341
        %v344 = vmul.f32 %v320, %v342
        %v345 = vpack.c.bf16 %v344, %v344
        %vm346 = vcmask 516096
        %347 = vst.msk [vmem:[%s181] sm:$0x1] %vm346, %v345
        %vm348 = vcmask 517120
        %v349 = vsel %vm348, %v344, 0.0
        %v350 = vrot.slane %v349, 4
        %v351 = vadd.f32 %v349, %v350
        %v352 = vrot.slane %v351, 2
        %v353 = vadd.f32 %v351, %v352
        %v354 = vrot.slane %v353, 1
        %v355 = vadd.f32 %v353, %v354
        %356 = vst.msk [vmem:[%s171] sm:$0x1] %vm346, %v355
        %s357 = scalar_lea.vmem %s176, 2
        %v358 = vld [vmem:[%s357] sm:$0x3]
        %v359 = vunpack.c.l.bf16 %v358
        %v360 = vld [vmem:[%s1] sm:$0xff]
        %v361 = vld [vmem:[%s1 + $0x8] sm:$0xff]
        %v362 = vld [vmem:[%s1 + $0x10] sm:$0xff]
        %v363 = vld [vmem:[%s1 + $0x18] sm:$0xff]
        %v364 = vld [vmem:[%s1 + $0x20] sm:$0xff]
        %v365 = vld [vmem:[%s1 + $0x28] sm:$0xff]
        %v366 = vld [vmem:[%s1 + $0x30] sm:$0xff]
        %v367 = vld [vmem:[%s1 + $0x38] sm:$0xff]
        %v376 = vunpack.c.l.b16 %v360
        %v377 = vunpack.c.h.b16 %v360
        %v378 = vunpack.c.l.b16 %v361
        %v379 = vunpack.c.h.b16 %v361
        %v380 = vunpack.c.l.b16 %v362
        %v381 = vunpack.c.h.b16 %v362
        %v382 = vunpack.c.l.b16 %v363
        %v383 = vunpack.c.h.b16 %v363
        %v384 = vunpack.c.l.b16 %v364
        %v385 = vunpack.c.h.b16 %v364
        %v386 = vunpack.c.l.b16 %v365
        %v387 = vunpack.c.h.b16 %v365
        %v388 = vunpack.c.l.b16 %v366
        %v389 = vunpack.c.h.b16 %v366
        %v390 = vunpack.c.l.b16 %v367
        %v391 = vunpack.c.h.b16 %v367
        %v392 = vpack.c.b16 %v378, %v376
        %v393 = vpack.c.b16 %v379, %v377
        %v394 = vpack.c.b16 %v382, %v380
        %v395 = vpack.c.b16 %v383, %v381
        %v396 = vpack.c.b16 %v386, %v384
        %v397 = vpack.c.b16 %v387, %v385
        %v398 = vpack.c.b16 %v390, %v388
        %v399 = vpack.c.b16 %v391, %v389
        %v409 = vsel %vm244, %v345, 0
        %411 = vmatprep.subr.bf16.mxu0 %v393
        %412 = vmatpush1.bf16.msra.mxu0 %v392
        %413 = vmatprep.subr.bf16.mxu0 %v395
        %414 = vmatpush1.bf16.msra.mxu0 %v394
        %415 = vmatprep.subr.bf16.mxu0 %v397
        %416 = vmatpush1.bf16.msra.mxu0 %v396
        %417 = vmatprep.subr.bf16.mxu0 %v399
        %418 = vmatpush1.bf16.msra.mxu0 %v398
        %419 = vmatprep.subr.bf16.mxu0 0
        %420 = vmatpush1.bf16.msra.mxu0 0
        %421 = vmatprep.subr.bf16.mxu0 0
        %422 = vmatpush1.bf16.msra.mxu0 0
        %423 = vmatprep.subr.bf16.mxu0 0
        %424 = vmatpush1.bf16.msra.mxu0 0
        %425 = vmatprep.subr.bf16.mxu0 0
        %426 = vmatpush1.bf16.msra.mxu0 0
        %427 = vmatprep.subr.bf16.mxu0 0
        %428 = vmatpush1.bf16.msra.mxu0 0
        %429 = vmatprep.subr.bf16.mxu0 0
        %430 = vmatpush1.bf16.msra.mxu0 0
        %431 = vmatprep.subr.bf16.mxu0 0
        %432 = vmatpush1.bf16.msra.mxu0 0
        %433 = vmatprep.subr.bf16.mxu0 0
        %434 = vmatpush1.bf16.msra.mxu0 0
        %435 = vmatprep.subr.bf16.mxu0 0
        %436 = vmatpush1.bf16.msra.mxu0 0
        %437 = vmatprep.subr.bf16.mxu0 0
        %438 = vmatpush1.bf16.msra.mxu0 0
        %439 = vmatprep.subr.bf16.mxu0 0
        %440 = vmatpush1.bf16.msra.mxu0 0
        %441 = vmatprep.subr.bf16.mxu0 0
        %442 = vmatpush1.bf16.msra.mxu0 0
        %443 = vmatprep.mubr.bf16.mxu0 0
        %444 = vmatmul.mubr.bf16.gmra.mrb[0].mxu0 %v409
        %v445 = vpop.f32.mrb[0].mxu0
        %v446 = vadd.f32 0.0, %v445
        %v447 = vpop.f32.mrb[0].mxu0
        %v448 = vadd.f32 0.0, %v447
        %v449 = vpop.f32.mrb[0].mxu0
        %v450 = vpop.f32.mrb[0].mxu0
        %451 = vdwg.mxu0
        %v454 = vcombine.low %v446, %v448
        %v456 = vunpack.c.l.s4 1983009808
        %v457 = vunpack.c.0.s8 %v456
        %v458 = vlaneseq
        %v459 = vshrl.u32 %v458, 7
        %v460 = vsub.s32 %v457, %v459
        %v461 = vrot.slane %v454, %v460
        %v463 = vadd.f32 %v359, %v461
        %v464 = vxor.u32 %v463, 2147483648
        %v465 = vmul.f32 %v464, 1.442695
        %v466 = vpow.pop %v465
        %v467 = vadd.f32 %v466, 1.0
        %v468 = vrcp.pop %v467
        %v469 = vmul.f32 1.0, %v468
        %v471 = vrot.slane %v463, 2
        %v473 = vtanh.pop %v471
        %474 = vrot.lane.b32.xlu0 %v463, 64
        %v475 = vpop.permute.xlu0 %474
        %v476 = vrot.slane %v475, 2
        %v478 = vxor.u32 %v476, 2147483648
        %v479 = vmul.f32 %v478, 1.442695
        %v480 = vpow.pop %v479
        %v481 = vadd.f32 %v480, 1.0
        %v482 = vrcp.pop %v481
        %v483 = vmul.f32 1.0, %v482
        %v484 = vmul.f32 %v469, %v338
        %v485 = vmul.f32 %v469, %v473
        %487 = vrot.lane.b32.xlu0 %v485, 64
        %v488 = vpop.permute.xlu0 %487
        %v490 = vadd.f32 %v484, %v488
        %v491 = vtanh.pop %v490
        %493 = vrot.lane.b32.xlu0 %v491, 64
        %v494 = vpop.permute.xlu0 %493
        %v496 = vmul.f32 %v483, %v494
        %v497 = vpack.c.bf16 %v496, %v496
        %s498 = scalar_lea.vmem %s181, 1
        %499 = vst.msk [vmem:[%s498] sm:$0x1] %vm346, %v497
        %v500 = vsel %vm348, %v496, 0.0
        %v501 = vrot.slane %v500, 4
        %v502 = vadd.f32 %v500, %v501
        %v503 = vrot.slane %v502, 2
        %v504 = vadd.f32 %v502, %v503
        %v505 = vrot.slane %v504, 1
        %v506 = vadd.f32 %v504, %v505
        %507 = vst.msk [vmem:[%s171 + $0x1] sm:$0x1] %vm346, %v506
        %s508 = scalar_lea.vmem %s176, 4
        %v509 = vld [vmem:[%s508] sm:$0x3]
        %v510 = vunpack.c.l.bf16 %v509
        %v511 = vld [vmem:[%s1] sm:$0xff]
        %v512 = vld [vmem:[%s1 + $0x8] sm:$0xff]
        %v513 = vld [vmem:[%s1 + $0x10] sm:$0xff]
        %v514 = vld [vmem:[%s1 + $0x18] sm:$0xff]
        %v515 = vld [vmem:[%s1 + $0x20] sm:$0xff]
        %v516 = vld [vmem:[%s1 + $0x28] sm:$0xff]
        %v517 = vld [vmem:[%s1 + $0x30] sm:$0xff]
        %v518 = vld [vmem:[%s1 + $0x38] sm:$0xff]
        %v527 = vunpack.c.l.b16 %v511
        %v528 = vunpack.c.h.b16 %v511
        %v529 = vunpack.c.l.b16 %v512
        %v530 = vunpack.c.h.b16 %v512
        %v531 = vunpack.c.l.b16 %v513
        %v532 = vunpack.c.h.b16 %v513
        %v533 = vunpack.c.l.b16 %v514
        %v534 = vunpack.c.h.b16 %v514
        %v535 = vunpack.c.l.b16 %v515
        %v536 = vunpack.c.h.b16 %v515
        %v537 = vunpack.c.l.b16 %v516
        %v538 = vunpack.c.h.b16 %v516
        %v539 = vunpack.c.l.b16 %v517
        %v540 = vunpack.c.h.b16 %v517
        %v541 = vunpack.c.l.b16 %v518
        %v542 = vunpack.c.h.b16 %v518
        %v543 = vpack.c.b16 %v529, %v527
        %v544 = vpack.c.b16 %v530, %v528
        %v545 = vpack.c.b16 %v533, %v531
        %v546 = vpack.c.b16 %v534, %v532
        %v547 = vpack.c.b16 %v537, %v535
        %v548 = vpack.c.b16 %v538, %v536
        %v549 = vpack.c.b16 %v541, %v539
        %v550 = vpack.c.b16 %v542, %v540
        %v560 = vsel %vm244, %v497, 0
        %562 = vmatprep.subr.bf16.mxu0 %v544
        %563 = vmatpush1.bf16.msra.mxu0 %v543
        %564 = vmatprep.subr.bf16.mxu0 %v546
        %565 = vmatpush1.bf16.msra.mxu0 %v545
        %566 = vmatprep.subr.bf16.mxu0 %v548
        %567 = vmatpush1.bf16.msra.mxu0 %v547
        %568 = vmatprep.subr.bf16.mxu0 %v550
        %569 = vmatpush1.bf16.msra.mxu0 %v549
        %570 = vmatprep.subr.bf16.mxu0 0
        %571 = vmatpush1.bf16.msra.mxu0 0
        %572 = vmatprep.subr.bf16.mxu0 0
        %573 = vmatpush1.bf16.msra.mxu0 0
        %574 = vmatprep.subr.bf16.mxu0 0
        %575 = vmatpush1.bf16.msra.mxu0 0
        %576 = vmatprep.subr.bf16.mxu0 0
        %577 = vmatpush1.bf16.msra.mxu0 0
        %578 = vmatprep.subr.bf16.mxu0 0
        %579 = vmatpush1.bf16.msra.mxu0 0
        %580 = vmatprep.subr.bf16.mxu0 0
        %581 = vmatpush1.bf16.msra.mxu0 0
        %582 = vmatprep.subr.bf16.mxu0 0
        %583 = vmatpush1.bf16.msra.mxu0 0
        %584 = vmatprep.subr.bf16.mxu0 0
        %585 = vmatpush1.bf16.msra.mxu0 0
        %586 = vmatprep.subr.bf16.mxu0 0
        %587 = vmatpush1.bf16.msra.mxu0 0
        %588 = vmatprep.subr.bf16.mxu0 0
        %589 = vmatpush1.bf16.msra.mxu0 0
        %590 = vmatprep.subr.bf16.mxu0 0
        %591 = vmatpush1.bf16.msra.mxu0 0
        %592 = vmatprep.subr.bf16.mxu0 0
        %593 = vmatpush1.bf16.msra.mxu0 0
        %594 = vmatprep.mubr.bf16.mxu0 0
        %595 = vmatmul.mubr.bf16.gmra.mrb[0].mxu0 %v560
        %v596 = vpop.f32.mrb[0].mxu0
        %v597 = vadd.f32 0.0, %v596
        %v598 = vpop.f32.mrb[0].mxu0
        %v599 = vadd.f32 0.0, %v598
        %v600 = vpop.f32.mrb[0].mxu0
        %v601 = vpop.f32.mrb[0].mxu0
        %602 = vdwg.mxu0
        %v605 = vcombine.low %v597, %v599
        %v607 = vunpack.c.l.s4 1983009808
        %v608 = vunpack.c.0.s8 %v607
        %v609 = vlaneseq
        %v610 = vshrl.u32 %v609, 7
        %v611 = vsub.s32 %v608, %v610
        %v612 = vrot.slane %v605, %v611
        %v614 = vadd.f32 %v510, %v612
        %v615 = vxor.u32 %v614, 2147483648
        %v616 = vmul.f32 %v615, 1.442695
        %v617 = vpow.pop %v616
        %v618 = vadd.f32 %v617, 1.0
        %v619 = vrcp.pop %v618
        %v620 = vmul.f32 1.0, %v619
        %v622 = vrot.slane %v614, 2
        %v624 = vtanh.pop %v622
        %625 = vrot.lane.b32.xlu0 %v614, 64
        %v626 = vpop.permute.xlu0 %625
        %v627 = vrot.slane %v626, 2
        %v629 = vxor.u32 %v627, 2147483648
        %v630 = vmul.f32 %v629, 1.442695
        %v631 = vpow.pop %v630
        %v632 = vadd.f32 %v631, 1.0
        %v633 = vrcp.pop %v632
        %v634 = vmul.f32 1.0, %v633
        %v635 = vmul.f32 %v620, %v490
        %v636 = vmul.f32 %v620, %v624
        %638 = vrot.lane.b32.xlu0 %v636, 64
        %v639 = vpop.permute.xlu0 %638
        %v641 = vadd.f32 %v635, %v639
        %v642 = vtanh.pop %v641
        %644 = vrot.lane.b32.xlu0 %v642, 64
        %v645 = vpop.permute.xlu0 %644
        %v647 = vmul.f32 %v634, %v645
        %v648 = vpack.c.bf16 %v647, %v647
        %s649 = scalar_lea.vmem %s181, 2
        %650 = vst.msk [vmem:[%s649] sm:$0x1] %vm346, %v648
        %v651 = vsel %vm348, %v647, 0.0
        %v652 = vrot.slane %v651, 4
        %v653 = vadd.f32 %v651, %v652
        %v654 = vrot.slane %v653, 2
        %v655 = vadd.f32 %v653, %v654
        %v656 = vrot.slane %v655, 1
        %v657 = vadd.f32 %v655, %v656
        %658 = vst.msk [vmem:[%s171 + $0x2] sm:$0x1] %vm346, %v657
        %s659 = scalar_lea.vmem %s176, 6
        %v660 = vld [vmem:[%s659] sm:$0x3]
        %v661 = vunpack.c.l.bf16 %v660
        %v662 = vld [vmem:[%s1] sm:$0xff]
        %v663 = vld [vmem:[%s1 + $0x8] sm:$0xff]
        %v664 = vld [vmem:[%s1 + $0x10] sm:$0xff]
        %v665 = vld [vmem:[%s1 + $0x18] sm:$0xff]
        %v666 = vld [vmem:[%s1 + $0x20] sm:$0xff]
        %v667 = vld [vmem:[%s1 + $0x28] sm:$0xff]
        %v668 = vld [vmem:[%s1 + $0x30] sm:$0xff]
        %v669 = vld [vmem:[%s1 + $0x38] sm:$0xff]
        %v678 = vunpack.c.l.b16 %v662
        %v679 = vunpack.c.h.b16 %v662
        %v680 = vunpack.c.l.b16 %v663
        %v681 = vunpack.c.h.b16 %v663
        %v682 = vunpack.c.l.b16 %v664
        %v683 = vunpack.c.h.b16 %v664
        %v684 = vunpack.c.l.b16 %v665
        %v685 = vunpack.c.h.b16 %v665
        %v686 = vunpack.c.l.b16 %v666
        %v687 = vunpack.c.h.b16 %v666
        %v688 = vunpack.c.l.b16 %v667
        %v689 = vunpack.c.h.b16 %v667
        %v690 = vunpack.c.l.b16 %v668
        %v691 = vunpack.c.h.b16 %v668
        %v692 = vunpack.c.l.b16 %v669
        %v693 = vunpack.c.h.b16 %v669
        %v694 = vpack.c.b16 %v680, %v678
        %v695 = vpack.c.b16 %v681, %v679
        %v696 = vpack.c.b16 %v684, %v682
        %v697 = vpack.c.b16 %v685, %v683
        %v698 = vpack.c.b16 %v688, %v686
        %v699 = vpack.c.b16 %v689, %v687
        %v700 = vpack.c.b16 %v692, %v690
        %v701 = vpack.c.b16 %v693, %v691
        %v711 = vsel %vm244, %v648, 0
        %713 = vmatprep.subr.bf16.mxu0 %v695
        %714 = vmatpush1.bf16.msra.mxu0 %v694
        %715 = vmatprep.subr.bf16.mxu0 %v697
        %716 = vmatpush1.bf16.msra.mxu0 %v696
        %717 = vmatprep.subr.bf16.mxu0 %v699
        %718 = vmatpush1.bf16.msra.mxu0 %v698
        %719 = vmatprep.subr.bf16.mxu0 %v701
        %720 = vmatpush1.bf16.msra.mxu0 %v700
        %721 = vmatprep.subr.bf16.mxu0 0
        %722 = vmatpush1.bf16.msra.mxu0 0
        %723 = vmatprep.subr.bf16.mxu0 0
        %724 = vmatpush1.bf16.msra.mxu0 0
        %725 = vmatprep.subr.bf16.mxu0 0
        %726 = vmatpush1.bf16.msra.mxu0 0
        %727 = vmatprep.subr.bf16.mxu0 0
        %728 = vmatpush1.bf16.msra.mxu0 0
        %729 = vmatprep.subr.bf16.mxu0 0
        %730 = vmatpush1.bf16.msra.mxu0 0
        %731 = vmatprep.subr.bf16.mxu0 0
        %732 = vmatpush1.bf16.msra.mxu0 0
        %733 = vmatprep.subr.bf16.mxu0 0
        %734 = vmatpush1.bf16.msra.mxu0 0
        %735 = vmatprep.subr.bf16.mxu0 0
        %736 = vmatpush1.bf16.msra.mxu0 0
        %737 = vmatprep.subr.bf16.mxu0 0
        %738 = vmatpush1.bf16.msra.mxu0 0
        %739 = vmatprep.subr.bf16.mxu0 0
        %740 = vmatpush1.bf16.msra.mxu0 0
        %741 = vmatprep.subr.bf16.mxu0 0
        %742 = vmatpush1.bf16.msra.mxu0 0
        %743 = vmatprep.subr.bf16.mxu0 0
        %744 = vmatpush1.bf16.msra.mxu0 0
        %745 = vmatprep.mubr.bf16.mxu0 0
        %746 = vmatmul.mubr.bf16.gmra.mrb[0].mxu0 %v711
        %v747 = vpop.f32.mrb[0].mxu0
        %v748 = vadd.f32 0.0, %v747
        %v749 = vpop.f32.mrb[0].mxu0
        %v750 = vadd.f32 0.0, %v749
        %v751 = vpop.f32.mrb[0].mxu0
        %v752 = vpop.f32.mrb[0].mxu0
        %753 = vdwg.mxu0
        %v756 = vcombine.low %v748, %v750
        %v758 = vunpack.c.l.s4 1983009808
        %v759 = vunpack.c.0.s8 %v758
        %v760 = vlaneseq
        %v761 = vshrl.u32 %v760, 7
        %v762 = vsub.s32 %v759, %v761
        %v763 = vrot.slane %v756, %v762
        %v765 = vadd.f32 %v661, %v763
        %v766 = vxor.u32 %v765, 2147483648
        %v767 = vmul.f32 %v766, 1.442695
        %v768 = vpow.pop %v767
        %v769 = vadd.f32 %v768, 1.0
        %v770 = vrcp.pop %v769
        %v771 = vmul.f32 1.0, %v770
        %v773 = vrot.slane %v765, 2
        %v775 = vtanh.pop %v773
        %776 = vrot.lane.b32.xlu0 %v765, 64
        %v777 = vpop.permute.xlu0 %776
        %v778 = vrot.slane %v777, 2
        %v780 = vxor.u32 %v778, 2147483648
        %v781 = vmul.f32 %v780, 1.442695
        %v782 = vpow.pop %v781
        %v783 = vadd.f32 %v782, 1.0
        %v784 = vrcp.pop %v783
        %v785 = vmul.f32 1.0, %v784
        %v786 = vmul.f32 %v771, %v641
        %v787 = vmul.f32 %v771, %v775
        %789 = vrot.lane.b32.xlu0 %v787, 64
        %v790 = vpop.permute.xlu0 %789
        %v792 = vadd.f32 %v786, %v790
        %v793 = vtanh.pop %v792
        %795 = vrot.lane.b32.xlu0 %v793, 64
        %v796 = vpop.permute.xlu0 %795
        %v798 = vmul.f32 %v785, %v796
        %v799 = vpack.c.bf16 %v798, %v798
        %s800 = scalar_lea.vmem %s181, 3
        %801 = vst.msk [vmem:[%s800] sm:$0x1] %vm346, %v799
        %v802 = vsel %vm348, %v798, 0.0
        %v803 = vrot.slane %v802, 4
        %v804 = vadd.f32 %v802, %v803
        %v805 = vrot.slane %v804, 2
        %v806 = vadd.f32 %v804, %v805
        %v807 = vrot.slane %v806, 1
        %v808 = vadd.f32 %v806, %v807
        %809 = vst.msk [vmem:[%s171 + $0x3] sm:$0x1] %vm346, %v808
        %810 = vst.msk [vmem:[#allocation2] sm:$0x3] %vm348, %v798
        %v813 = vunpack.c.l.s4 1983009808
        %v814 = vunpack.c.0.s8 %v813
        %v815 = vlaneseq
        %v816 = vshrl.u32 %v815, 7
        %v817 = vsub.s32 %v814, %v816
        %v818 = vrot.slane %v792, %v817
        %819 = vrot.lane.b32.xlu0 %v818, 64
        %v820 = vpop.permute.xlu0 %819
        %822 = vst.msk [vmem:[#allocation3] sm:$0x3] %vm348, %v820
        %s823 = smul.u32 4, %s18
        %p824 = scmp.lt.s32.totalorder %s823, 7
        %s825 = scalar_select %p824, %s823, 7
        %s826 = scalar_lea.vmem %s2, %s825
        %s827 = sand.u32 %s99, 1
        %s828 = scalar_lea.sflag [#allocation5], %s827
        %s829 = sand.u32 %s99, 1
        %s830 = smul.addr %s829, 4
        %s831 = scalar_lea.vmem [#allocation4], %s830
        // Predicated region
        $region33: #{batch_descriptor_forward.2} parent=27 // pred_check
          %p832 = pneg %p83
        $region34: #{batch_descriptor_forward.2} parent=27 // pred_check_branch
          %834 = sbr.rel (%p832) target = $region36
        $region35: #{batch_descriptor_forward.2} parent=27 // pred_region
          %s835 = smul.u32 4, %s18
        $region36: #{batch_descriptor_forward.2} parent=27 // pred_fallthru
          _
        // Predicated region
        $region37: #{batch_descriptor_forward.2} parent=27 // pred_check
          %p836 = pneg %p109
        $region38: #{batch_descriptor_forward.2} parent=27 // pred_check_branch
          %838 = sbr.rel (%p836) target = $region40
        $region39: #{batch_descriptor_forward.2} parent=27 // pred_region
          %s840 = ssub.s32 64, 64
          %841 = vsyncadd %s828, %s840
          %s842 = smul.addr %s18, 64
          %s843 = scalar_lea.hbm %s3, %s842
          %s845 = sshll.u32 %s831, 4
          %s846 = int_to_ptr.vmem [resolvable:$true] %s845
          %848 = dma.vmem_to_hbm [thread:$0]  %s846, 64, %s843, %s828
        $region40: #{batch_descriptor_forward.2} parent=27 // pred_fallthru
          _
      $region28: #{batch_descriptor_forward.2} parent=5 // pred_fallthru
        _
      %p849 = scmp.le.s32.totalorder 2, %s13
      // Predicated region
      $region41: #{batch_descriptor_forward.2} parent=5 // pred_check
        %p850 = pneg %p849
      $region42: #{batch_descriptor_forward.2} parent=5 // pred_check_branch
        %852 = sbr.rel (%p850) target = $region44
      $region43: #{batch_descriptor_forward.2} parent=5 // pred_region
        %s853 = ssub.s32 %s13, 2
        // Predicated region
        $region45: #{batch_descriptor_forward.2} parent=43 // pred_check
          %p854 = pneg %p89
        $region46: #{batch_descriptor_forward.2} parent=43 // pred_check_branch
          %856 = sbr.rel (%p854) target = $region48
        $region47: #{batch_descriptor_forward.2} parent=43 // pred_region
          %s857 = smul.u32 4, %s19
          %p858 = scmp.lt.s32.totalorder %s857, 7
          %s859 = scalar_select %p858, %s857, 7
          %s860 = scalar_lea.vmem %s2, %s859
        $region48: #{batch_descriptor_forward.2} parent=43 // pred_fallthru
          _
        // Predicated region
        $region49: #{batch_descriptor_forward.2} parent=43 // pred_check
          %p861 = pneg %p115
        $region50: #{batch_descriptor_forward.2} parent=43 // pred_check_branch
          %863 = sbr.rel (%p861) target = $region52
        $region51: #{batch_descriptor_forward.2} parent=43 // pred_region
          %s864 = sand.u32 %s100, 1
          %s865 = scalar_lea.sflag [#allocation5], %s864
          %s866 = sand.u32 %s100, 1
          %s867 = smul.addr %s866, 4
          %s868 = scalar_lea.vmem [#allocation4], %s867
          %869 = dma.done %s865, 64
        $region52: #{batch_descriptor_forward.2} parent=43 // pred_fallthru
          _
      $region44: #{batch_descriptor_forward.2} parent=5 // pred_fallthru
        _
    $region6: #{batch_descriptor_forward.2} parent=1 // loop_footer
      %s17 = sadd.s32 1, %s13
    $region7: #{batch_descriptor_forward.2} parent=1 // loop_footer_branch
      %12 = sbr.rel target = $region3
    $region8: #{batch_descriptor_forward.2} parent=1 // loop_exit
      _
    %870 = vsyncpa [#allocation5], 1
    %s871 = scalar_lea.sflag [#allocation5], 1
    %872 = vsyncpa %s871, 1

// kernel: batch_descriptor_forward.3
$region0: #{batch_descriptor_forward.3}
  #allocation0 [shape = 'u32[]', space=smem, size = 0x4, offset = 0x4, fixed_abs, tag = 'smem constant byte address 0x4 - core index']
  #allocation1 [shape = 'u32[144,128]{1,0:T(1,128)}', space=vmem, size = 0x12000, scoped, tag = 'internal scratch']
  #allocation2 [shape = 'f32[2,64]{1,0:T(2,128)}', space=vmem, size = 0x400, scoped, tag = 'scratch operand']
  #allocation3 [shape = 'f32[2,64]{1,0:T(2,128)}', space=vmem, size = 0x400, scoped, tag = 'scratch operand']
  %s0 = inlined_call_operand.vmem [shape: bf16[8,2,256], index: 0, kind: input, shape index: {}]
  %s1 = inlined_call_operand.vmem [shape: bf16[64,256], index: 1, kind: input, shape index: {}]
  %s2 = inlined_call_operand.vmem [shape: f32[2,4,64], index: 2, kind: output, shape index: {}]
  %s3 = sld [smem:[#allocation0]]
  $region45: #{batch_descriptor_forward.3} parent=0
    _
  %s5 = ssub.s32 1, %s3
  %s6 = scalar_select 0, %s5, %s3
  loop: start=0, step=1, limit=4
  $region2: #{batch_descriptor_forward.3} parent=0 // loop_pre_header
    _
  $region3: #{batch_descriptor_forward.3} parent=0 // loop_header
    %s8 = sphi 0, %s12
    %p9 = scmp.ge.s32.totalorder %s8, 4
    %s18 = sphi 0, %s20
    %s21 = sphi 0, %s18
    %s22 = sphi 0, %s21
    %s38 = sphi 0, %s22
    %s42 = sphi 0, %s42
    %s44 = sphi 0, %s42
    %s45 = sphi 0, %s44
    %s59 = sphi 0, %s45
    %s65 = sphi 0, %s67
    %s68 = sphi 0, %s65
    %s69 = sphi 0, %s68
    %s85 = sphi 0, %s69
  $region4: #{batch_descriptor_forward.3} parent=0 // loop_header_branch
    %11 = sbr.rel (%p9) target = $region8
  $region5: #{batch_descriptor_forward.3} parent=0 // loop_body
    %s13 = ssub.s32 %s8, 1
    %s14 = ssub.s32 %s8, 2
    %s15 = sadd.s32 %s8, 1
    %s16 = ssub.s32 %s8, %s15
    %p17 = scmp.eq.s32.totalorder %s16, 0
    %s19 = sadd.s32 %s18, 1
    %s20 = scalar_select %p17, %s18, %s19
    %p23 = pneg %p17
    %p24 = scmp.eq.s32.totalorder %s8, 1
    %p25 = por %p23, %p24
    %p26 = scmp.ne.s32.totalorder %s18, %s21
    %p27 = scmp.eq.s32.totalorder %s8, 0
    %p28 = por %p26, %p27
    %p29 = scmp.ne.s32.totalorder %s18, %s21
    %p30 = scmp.eq.s32.totalorder %s13, 1
    %p31 = por %p29, %p30
    %p32 = scmp.ne.s32.totalorder %s21, %s22
    %p33 = scmp.eq.s32.totalorder %s13, 0
    %p34 = por %p32, %p33
    %p35 = scmp.ne.s32.totalorder %s21, %s22
    %p36 = scmp.eq.s32.totalorder %s14, 1
    %p37 = por %p35, %p36
    %p39 = scmp.ne.s32.totalorder %s22, %s38
    %p40 = scmp.eq.s32.totalorder %s14, 0
    %p41 = por %p39, %p40
    %s43 = sadd.s32 %s42, 1
    %p46 = scmp.eq.s32.totalorder %s8, 1
    %p47 = scmp.ne.s32.totalorder %s42, %s44
    %p48 = scmp.eq.s32.totalorder %s8, 0
    %p49 = por %p47, %p48
    %p50 = scmp.ne.s32.totalorder %s42, %s44
    %p51 = scmp.eq.s32.totalorder %s13, 1
    %p52 = por %p50, %p51
    %p53 = scmp.ne.s32.totalorder %s44, %s45
    %p54 = scmp.eq.s32.totalorder %s13, 0
    %p55 = por %p53, %p54
    %p56 = scmp.ne.s32.totalorder %s44, %s45
    %p57 = scmp.eq.s32.totalorder %s14, 1
    %p58 = por %p56, %p57
    %p60 = scmp.ne.s32.totalorder %s45, %s59
    %p61 = scmp.eq.s32.totalorder %s14, 0
    %p62 = por %p60, %p61
    %s63 = ssub.s32 %s8, %s15
    %p64 = scmp.eq.s32.totalorder %s63, 0
    %s66 = sadd.s32 %s65, 1
    %s67 = scalar_select %p64, %s65, %s66
    %p70 = pneg %p64
    %p71 = scmp.eq.s32.totalorder %s8, 1
    %p72 = por %p70, %p71
    %p73 = scmp.ne.s32.totalorder %s65, %s68
    %p74 = scmp.eq.s32.totalorder %s8, 0
    %p75 = por %p73, %p74
    %p76 = scmp.ne.s32.totalorder %s65, %s68
    %p77 = scmp.eq.s32.totalorder %s13, 1
    %p78 = por %p76, %p77
    %p79 = scmp.ne.s32.totalorder %s68, %s69
    %p80 = scmp.eq.s32.totalorder %s13, 0
    %p81 = por %p79, %p80
    %p82 = scmp.ne.s32.totalorder %s68, %s69
    %p83 = scmp.eq.s32.totalorder %s14, 1
    %p84 = por %p82, %p83
    %p86 = scmp.ne.s32.totalorder %s69, %s85
    %p87 = scmp.eq.s32.totalorder %s14, 0
    %p88 = por %p86, %p87
    %p89 = scmp.le.s32.totalorder 1, %s8
    %p90 = scmp.lt.s32.totalorder %s8, 3
    %p91 = pnand %p89, %p90
    %p92 = pneg %p91
    // Predicated region
    $region9: #{batch_descriptor_forward.3} parent=5 // pred_check
      _
    $region10: #{batch_descriptor_forward.3} parent=5 // pred_check_branch
      %94 = sbr.rel (%p91) target = $region12
    $region11: #{batch_descriptor_forward.3} parent=5 // pred_region
      %s95 = ssub.s32 %s8, 1
      // Predicated region
      $region13: #{batch_descriptor_forward.3} parent=11 // pred_check
        %p96 = pneg %p55
      $region14: #{batch_descriptor_forward.3} parent=11 // pred_check_branch
        %98 = sbr.rel (%p96) target = $region16
      $region15: #{batch_descriptor_forward.3} parent=11 // pred_region
        _
      $region16: #{batch_descriptor_forward.3} parent=11 // pred_fallthru
        _
    $region12: #{batch_descriptor_forward.3} parent=5 // pred_fallthru
      _
    %p99 = scmp.lt.s32.totalorder %s8, 2
    // Predicated region
    $region17: #{batch_descriptor_forward.3} parent=5 // pred_check
      %p100 = pneg %p99
    $region18: #{batch_descriptor_forward.3} parent=5 // pred_check_branch
      %102 = sbr.rel (%p100) target = $region20
    $region19: #{batch_descriptor_forward.3} parent=5 // pred_region
      // Predicated region
      $region21: #{batch_descriptor_forward.3} parent=19 // pred_check
        %p103 = pneg %p28
      $region22: #{batch_descriptor_forward.3} parent=19 // pred_check_branch
        %105 = sbr.rel (%p103) target = $region24
      $region23: #{batch_descriptor_forward.3} parent=19 // pred_region
        %s106 = smul.u32 4, %s8
        %p107 = scmp.lt.s32.totalorder %s106, 7
        %s108 = scalar_select %p107, %s106, 7
        %s109 = smul.addr %s108, 2
        %s110 = scalar_lea.vmem %s0, %s109
        %s111 = smul.u32 4, %s8
      $region24: #{batch_descriptor_forward.3} parent=19 // pred_fallthru
        _
    $region20: #{batch_descriptor_forward.3} parent=5 // pred_fallthru
      _
    %p112 = scmp.le.s32.totalorder 1, %s8
    %p113 = scmp.lt.s32.totalorder %s8, 3
    %p114 = pnand %p112, %p113
    %p115 = pneg %p114
    // Predicated region
    $region25: #{batch_descriptor_forward.3} parent=5 // pred_check
      _
    $region26: #{batch_descriptor_forward.3} parent=5 // pred_check_branch
      %117 = sbr.rel (%p114) target = $region28
    $region27: #{batch_descriptor_forward.3} parent=5 // pred_region
      %s118 = ssub.s32 %s8, 1
      %s119 = smul.u32 4, %s13
      %p120 = scmp.lt.s32.totalorder %s119, 7
      %s121 = scalar_select %p120, %s119, 7
      %s122 = smul.addr %s121, 2
      %s123 = scalar_lea.vmem %s0, %s122
      %p124 = pneg %p34
      %p125 = pneg %p31
      %p126 = pneg %p55
      %p127 = pneg %p52
      %p128 = pneg %p81
      %p129 = pneg %p78
      %p130 = scmp.lt.s32.totalorder %s13, 1
      %s131 = scalar_select %p130, %s13, 1
      %s132 = smul.addr %s131, 4
      %s133 = scalar_lea.vmem %s2, %s132
      %s134 = smul.u32 4, %s13
      %p135 = scmp.lt.s32.totalorder %s134, 7
      %s136 = scalar_select %p135, %s134, 7
      %s137 = smul.addr %s136, 2
      %s138 = scalar_lea.vmem %s0, %s137
      %s139 = smul.u32 4, %s13
      %p140 = scmp.lt.s32.totalorder %s13, 1
      %s141 = scalar_select %p140, %s13, 1
      %s142 = smul.addr %s141, 4
      %s143 = scalar_lea.vmem %s2, %s142
      %p145 = scmp.eq.s32.totalorder %s13, 0
      // Predicated region
      $region29: #{batch_descriptor_forward.3} parent=27 // pred_check
        %p146 = pneg %p145
      $region30: #{batch_descriptor_forward.3} parent=27 // pred_check_branch
        %148 = sbr.rel (%p146) target = $region32
      $region31: #{batch_descriptor_forward.3} parent=27 // pred_region
        %vm149 = vcmask 517120
        %150 = vst.msk [vmem:[#allocation2] sm:$0x3] %vm149, 0.0
        %151 = vst.msk [vmem:[#allocation3] sm:$0x3] %vm149, 0.0
      $region32: #{batch_descriptor_forward.3} parent=27 // pred_fallthru
        _
      %v152 = vld [vmem:[#allocation2] sm:$0x3]
      %v153 = vld [vmem:[#allocation3] sm:$0x3]
      %v154 = vld [vmem:[%s138] sm:$0x3]
      %v155 = vunpack.c.l.bf16 %v154
      %v156 = vpack.c.bf16 %v152, %v152
      %v157 = vld [vmem:[%s1] sm:$0xff]
      %v158 = vld [vmem:[%s1 + $0x8] sm:$0xff]
      %v159 = vld [vmem:[%s1 + $0x10] sm:$0xff]
      %v160 = vld [vmem:[%s1 + $0x18] sm:$0xff]
      %v161 = vld [vmem:[%s1 + $0x20] sm:$0xff]
      %v162 = vld [vmem:[%s1 + $0x28] sm:$0xff]
      %v163 = vld [vmem:[%s1 + $0x30] sm:$0xff]
      %v164 = vld [vmem:[%s1 + $0x38] sm:$0xff]
      %v173 = vunpack.c.l.b16 %v157
      %v174 = vunpack.c.h.b16 %v157
      %v175 = vunpack.c.l.b16 %v158
      %v176 = vunpack.c.h.b16 %v158
      %v177 = vunpack.c.l.b16 %v159
      %v178 = vunpack.c.h.b16 %v159
      %v179 = vunpack.c.l.b16 %v160
      %v180 = vunpack.c.h.b16 %v160
      %v181 = vunpack.c.l.b16 %v161
      %v182 = vunpack.c.h.b16 %v161
      %v183 = vunpack.c.l.b16 %v162
      %v184 = vunpack.c.h.b16 %v162
      %v185 = vunpack.c.l.b16 %v163
      %v186 = vunpack.c.h.b16 %v163
      %v187 = vunpack.c.l.b16 %v164
      %v188 = vunpack.c.h.b16 %v164
      %v189 = vpack.c.b16 %v175, %v173
      %v190 = vpack.c.b16 %v176, %v174
      %v191 = vpack.c.b16 %v179, %v177
      %v192 = vpack.c.b16 %v180, %v178
      %v193 = vpack.c.b16 %v183, %v181
      %v194 = vpack.c.b16 %v184, %v182
      %v195 = vpack.c.b16 %v187, %v185
      %v196 = vpack.c.b16 %v188, %v186
      %vm205 = vcmask 523264
      %v207 = vsel %vm205, %v156, 0
      %209 = vmatprep.subr.bf16.mxu0 %v190
      %210 = vmatpush1.bf16.msra.mxu0 %v189
      %211 = vmatprep.subr.bf16.mxu0 %v192
      %212 = vmatpush1.bf16.msra.mxu0 %v191
      %213 = vmatprep.subr.bf16.mxu0 %v194
      %214 = vmatpush1.bf16.msra.mxu0 %v193
      %215 = vmatprep.subr.bf16.mxu0 %v196
      %216 = vmatpush1.bf16.msra.mxu0 %v195
      %217 = vmatprep.subr.bf16.mxu0 0
      %218 = vmatpush1.bf16.msra.mxu0 0
      %219 = vmatprep.subr.bf16.mxu0 0
      %220 = vmatpush1.bf16.msra.mxu0 0
      %221 = vmatprep.subr.bf16.mxu0 0
      %222 = vmatpush1.bf16.msra.mxu0 0
      %223 = vmatprep.subr.bf16.mxu0 0
      %224 = vmatpush1.bf16.msra.mxu0 0
      %225 = vmatprep.subr.bf16.mxu0 0
      %226 = vmatpush1.bf16.msra.mxu0 0
      %227 = vmatprep.subr.bf16.mxu0 0
      %228 = vmatpush1.bf16.msra.mxu0 0
      %229 = vmatprep.subr.bf16.mxu0 0
      %230 = vmatpush1.bf16.msra.mxu0 0
      %231 = vmatprep.subr.bf16.mxu0 0
      %232 = vmatpush1.bf16.msra.mxu0 0
      %233 = vmatprep.subr.bf16.mxu0 0
      %234 = vmatpush1.bf16.msra.mxu0 0
      %235 = vmatprep.subr.bf16.mxu0 0
      %236 = vmatpush1.bf16.msra.mxu0 0
      %237 = vmatprep.subr.bf16.mxu0 0
      %238 = vmatpush1.bf16.msra.mxu0 0
      %239 = vmatprep.subr.bf16.mxu0 0
      %240 = vmatpush1.bf16.msra.mxu0 0
      %241 = vmatprep.mubr.bf16.mxu0 0
      %242 = vmatmul.mubr.bf16.gmra.mrb[0].mxu0 %v207
      %v243 = vpop.f32.mrb[0].mxu0
      %v244 = vadd.f32 0.0, %v243
      %v245 = vpop.f32.mrb[0].mxu0
      %v246 = vadd.f32 0.0, %v245
      %v247 = vpop.f32.mrb[0].mxu0
      %v248 = vpop.f32.mrb[0].mxu0
      %249 = vdwg.mxu0
      %v252 = vcombine.low %v244, %v246
      %v254 = vunpack.c.l.s4 1983009808
      %v255 = vunpack.c.0.s8 %v254
      %v256 = vlaneseq
      %v257 = vshrl.u32 %v256, 7
      %v258 = vsub.s32 %v255, %v257
      %v259 = vrot.slane %v252, %v258
      %v261 = vadd.f32 %v155, %v259
      %v262 = vxor.u32 %v261, 2147483648
      %v263 = vmul.f32 %v262, 1.442695
      %v264 = vpow.pop %v263
      %v265 = vadd.f32 %v264, 1.0
      %v266 = vrcp.pop %v265
      %v267 = vmul.f32 1.0, %v266
      %v269 = vrot.slane %v261, 2
      %v271 = vtanh.pop %v269
      %272 = vrot.lane.b32.xlu0 %v261, 64
      %v273 = vpop.permute.xlu0 %272
      %v274 = vrot.slane %v273, 2
      %v276 = vxor.u32 %v274, 2147483648
      %v277 = vmul.f32 %v276, 1.442695
      %v278 = vpow.pop %v277
      %v279 = vadd.f32 %v278, 1.0
      %v280 = vrcp.pop %v279
      %v281 = vmul.f32 1.0, %v280
      %v284 = vunpack.c.l.s4 1983009808
      %v285 = vunpack.c.0.s8 %v284
      %v286 = vlaneseq
      %v287 = vshrl.u32 %v286, 7
      %v288 = vsub.s32 %v285, %v287
      %v289 = vrot.slane %v153, %v288
      %290 = vrot.lane.b32.xlu0 %v289, 64
      %v291 = vpop.permute.xlu0 %290
      %v293 = vmul.f32 %v267, %v291
      %v294 = vmul.f32 %v267, %v271
      %296 = vrot.lane.b32.xlu0 %v294, 64
      %v297 = vpop.permute.xlu0 %296
      %v299 = vadd.f32 %v293, %v297
      %v300 = vtanh.pop %v299
      %302 = vrot.lane.b32.xlu0 %v300, 64
      %v303 = vpop.permute.xlu0 %302
      %v305 = vmul.f32 %v281, %v303
      %vm306 = vcmask 517120
      %v307 = vsel %vm306, %v305, 0.0
      %v308 = vrot.slane %v307, 4
      %v309 = vadd.f32 %v307, %v308
      %v310 = vrot.slane %v309, 2
      %v311 = vadd.f32 %v309, %v310
      %v312 = vrot.slane %v311, 1
      %v313 = vadd.f32 %v311, %v312
      %vm314 = vcmask 516096
      %315 = vst.msk [vmem:[%s143] sm:$0x1] %vm314, %v313
      %s316 = scalar_lea.vmem %s138, 2
      %v317 = vld [vmem:[%s316] sm:$0x3]
      %v318 = vunpack.c.l.bf16 %v317
      %v319 = vpack.c.bf16 %v305, %v305
      %v320 = vld [vmem:[%s1] sm:$0xff]
      %v321 = vld [vmem:[%s1 + $0x8] sm:$0xff]
      %v322 = vld [vmem:[%s1 + $0x10] sm:$0xff]
      %v323 = vld [vmem:[%s1 + $0x18] sm:$0xff]
      %v324 = vld [vmem:[%s1 + $0x20] sm:$0xff]
      %v325 = vld [vmem:[%s1 + $0x28] sm:$0xff]
      %v326 = vld [vmem:[%s1 + $0x30] sm:$0xff]
      %v327 = vld [vmem:[%s1 + $0x38] sm:$0xff]
      %v336 = vunpack.c.l.b16 %v320
      %v337 = vunpack.c.h.b16 %v320
      %v338 = vunpack.c.l.b16 %v321
      %v339 = vunpack.c.h.b16 %v321
      %v340 = vunpack.c.l.b16 %v322
      %v341 = vunpack.c.h.b16 %v322
      %v342 = vunpack.c.l.b16 %v323
      %v343 = vunpack.c.h.b16 %v323
      %v344 = vunpack.c.l.b16 %v324
      %v345 = vunpack.c.h.b16 %v324
      %v346 = vunpack.c.l.b16 %v325
      %v347 = vunpack.c.h.b16 %v325
      %v348 = vunpack.c.l.b16 %v326
      %v349 = vunpack.c.h.b16 %v326
      %v350 = vunpack.c.l.b16 %v327
      %v351 = vunpack.c.h.b16 %v327
      %v352 = vpack.c.b16 %v338, %v336
      %v353 = vpack.c.b16 %v339, %v337
      %v354 = vpack.c.b16 %v342, %v340
      %v355 = vpack.c.b16 %v343, %v341
      %v356 = vpack.c.b16 %v346, %v344
      %v357 = vpack.c.b16 %v347, %v345
      %v358 = vpack.c.b16 %v350, %v348
      %v359 = vpack.c.b16 %v351, %v349
      %v369 = vsel %vm205, %v319, 0
      %371 = vmatprep.subr.bf16.mxu0 %v353
      %372 = vmatpush1.bf16.msra.mxu0 %v352
      %373 = vmatprep.subr.bf16.mxu0 %v355
      %374 = vmatpush1.bf16.msra.mxu0 %v354
      %375 = vmatprep.subr.bf16.mxu0 %v357
      %376 = vmatpush1.bf16.msra.mxu0 %v356
      %377 = vmatprep.subr.bf16.mxu0 %v359
      %378 = vmatpush1.bf16.msra.mxu0 %v358
      %379 = vmatprep.subr.bf16.mxu0 0
      %380 = vmatpush1.bf16.msra.mxu0 0
      %381 = vmatprep.subr.bf16.mxu0 0
      %382 = vmatpush1.bf16.msra.mxu0 0
      %383 = vmatprep.subr.bf16.mxu0 0
      %384 = vmatpush1.bf16.msra.mxu0 0
      %385 = vmatprep.subr.bf16.mxu0 0
      %386 = vmatpush1.bf16.msra.mxu0 0
      %387 = vmatprep.subr.bf16.mxu0 0
      %388 = vmatpush1.bf16.msra.mxu0 0
      %389 = vmatprep.subr.bf16.mxu0 0
      %390 = vmatpush1.bf16.msra.mxu0 0
      %391 = vmatprep.subr.bf16.mxu0 0
      %392 = vmatpush1.bf16.msra.mxu0 0
      %393 = vmatprep.subr.bf16.mxu0 0
      %394 = vmatpush1.bf16.msra.mxu0 0
      %395 = vmatprep.subr.bf16.mxu0 0
      %396 = vmatpush1.bf16.msra.mxu0 0
      %397 = vmatprep.subr.bf16.mxu0 0
      %398 = vmatpush1.bf16.msra.mxu0 0
      %399 = vmatprep.subr.bf16.mxu0 0
      %400 = vmatpush1.bf16.msra.mxu0 0
      %401 = vmatprep.subr.bf16.mxu0 0
      %402 = vmatpush1.bf16.msra.mxu0 0
      %403 = vmatprep.mubr.bf16.mxu0 0
      %404 = vmatmul.mubr.bf16.gmra.mrb[0].mxu0 %v369
      %v405 = vpop.f32.mrb[0].mxu0
      %v406 = vadd.f32 0.0, %v405
      %v407 = vpop.f32.mrb[0].mxu0
      %v408 = vadd.f32 0.0, %v407
      %v409 = vpop.f32.mrb[0].mxu0
      %v410 = vpop.f32.mrb[0].mxu0
      %411 = vdwg.mxu0
      %v414 = vcombine.low %v406, %v408
      %v416 = vunpack.c.l.s4 1983009808
      %v417 = vunpack.c.0.s8 %v416
      %v418 = vlaneseq
      %v419 = vshrl.u32 %v418, 7
      %v420 = vsub.s32 %v417, %v419
      %v421 = vrot.slane %v414, %v420
      %v423 = vadd.f32 %v318, %v421
      %v424 = vxor.u32 %v423, 2147483648
      %v425 = vmul.f32 %v424, 1.442695
      %v426 = vpow.pop %v425
      %v427 = vadd.f32 %v426, 1.0
      %v428 = vrcp.pop %v427
      %v429 = vmul.f32 1.0, %v428
      %v431 = vrot.slane %v423, 2
      %v433 = vtanh.pop %v431
      %434 = vrot.lane.b32.xlu0 %v423, 64
      %v435 = vpop.permute.xlu0 %434
      %v436 = vrot.slane %v435, 2
      %v438 = vxor.u32 %v436, 2147483648
      %v439 = vmul.f32 %v438, 1.442695
      %v440 = vpow.pop %v439
      %v441 = vadd.f32 %v440, 1.0
      %v442 = vrcp.pop %v441
      %v443 = vmul.f32 1.0, %v442
      %v444 = vmul.f32 %v429, %v299
      %v445 = vmul.f32 %v429, %v433
      %447 = vrot.lane.b32.xlu0 %v445, 64
      %v448 = vpop.permute.xlu0 %447
      %v450 = vadd.f32 %v444, %v448
      %v451 = vtanh.pop %v450
      %453 = vrot.lane.b32.xlu0 %v451, 64
      %v454 = vpop.permute.xlu0 %453
      %v456 = vmul.f32 %v443, %v454
      %v457 = vsel %vm306, %v456, 0.0
      %v458 = vrot.slane %v457, 4
      %v459 = vadd.f32 %v457, %v458
      %v460 = vrot.slane %v459, 2
      %v461 = vadd.f32 %v459, %v460
      %v462 = vrot.slane %v461, 1
      %v463 = vadd.f32 %v461, %v462
      %464 = vst.msk [vmem:[%s143 + $0x1] sm:$0x1] %vm314, %v463
      %s465 = scalar_lea.vmem %s138, 4
      %v466 = vld [vmem:[%s465] sm:$0x3]
      %v467 = vunpack.c.l.bf16 %v466
      %v468 = vpack.c.bf16 %v456, %v456
      %v469 = vld [vmem:[%s1] sm:$0xff]
      %v470 = vld [vmem:[%s1 + $0x8] sm:$0xff]
      %v471 = vld [vmem:[%s1 + $0x10] sm:$0xff]
      %v472 = vld [vmem:[%s1 + $0x18] sm:$0xff]
      %v473 = vld [vmem:[%s1 + $0x20] sm:$0xff]
      %v474 = vld [vmem:[%s1 + $0x28] sm:$0xff]
      %v475 = vld [vmem:[%s1 + $0x30] sm:$0xff]
      %v476 = vld [vmem:[%s1 + $0x38] sm:$0xff]
      %v485 = vunpack.c.l.b16 %v469
      %v486 = vunpack.c.h.b16 %v469
      %v487 = vunpack.c.l.b16 %v470
      %v488 = vunpack.c.h.b16 %v470
      %v489 = vunpack.c.l.b16 %v471
      %v490 = vunpack.c.h.b16 %v471
      %v491 = vunpack.c.l.b16 %v472
      %v492 = vunpack.c.h.b16 %v472
      %v493 = vunpack.c.l.b16 %v473
      %v494 = vunpack.c.h.b16 %v473
      %v495 = vunpack.c.l.b16 %v474
      %v496 = vunpack.c.h.b16 %v474
      %v497 = vunpack.c.l.b16 %v475
      %v498 = vunpack.c.h.b16 %v475
      %v499 = vunpack.c.l.b16 %v476
      %v500 = vunpack.c.h.b16 %v476
      %v501 = vpack.c.b16 %v487, %v485
      %v502 = vpack.c.b16 %v488, %v486
      %v503 = vpack.c.b16 %v491, %v489
      %v504 = vpack.c.b16 %v492, %v490
      %v505 = vpack.c.b16 %v495, %v493
      %v506 = vpack.c.b16 %v496, %v494
      %v507 = vpack.c.b16 %v499, %v497
      %v508 = vpack.c.b16 %v500, %v498
      %v518 = vsel %vm205, %v468, 0
      %520 = vmatprep.subr.bf16.mxu0 %v502
      %521 = vmatpush1.bf16.msra.mxu0 %v501
      %522 = vmatprep.subr.bf16.mxu0 %v504
      %523 = vmatpush1.bf16.msra.mxu0 %v503
      %524 = vmatprep.subr.bf16.mxu0 %v506
      %525 = vmatpush1.bf16.msra.mxu0 %v505
      %526 = vmatprep.subr.bf16.mxu0 %v508
      %527 = vmatpush1.bf16.msra.mxu0 %v507
      %528 = vmatprep.subr.bf16.mxu0 0
      %529 = vmatpush1.bf16.msra.mxu0 0
      %530 = vmatprep.subr.bf16.mxu0 0
      %531 = vmatpush1.bf16.msra.mxu0 0
      %532 = vmatprep.subr.bf16.mxu0 0
      %533 = vmatpush1.bf16.msra.mxu0 0
      %534 = vmatprep.subr.bf16.mxu0 0
      %535 = vmatpush1.bf16.msra.mxu0 0
      %536 = vmatprep.subr.bf16.mxu0 0
      %537 = vmatpush1.bf16.msra.mxu0 0
      %538 = vmatprep.subr.bf16.mxu0 0
      %539 = vmatpush1.bf16.msra.mxu0 0
      %540 = vmatprep.subr.bf16.mxu0 0
      %541 = vmatpush1.bf16.msra.mxu0 0
      %542 = vmatprep.subr.bf16.mxu0 0
      %543 = vmatpush1.bf16.msra.mxu0 0
      %544 = vmatprep.subr.bf16.mxu0 0
      %545 = vmatpush1.bf16.msra.mxu0 0
      %546 = vmatprep.subr.bf16.mxu0 0
      %547 = vmatpush1.bf16.msra.mxu0 0
      %548 = vmatprep.subr.bf16.mxu0 0
      %549 = vmatpush1.bf16.msra.mxu0 0
      %550 = vmatprep.subr.bf16.mxu0 0
      %551 = vmatpush1.bf16.msra.mxu0 0
      %552 = vmatprep.mubr.bf16.mxu0 0
      %553 = vmatmul.mubr.bf16.gmra.mrb[0].mxu0 %v518
      %v554 = vpop.f32.mrb[0].mxu0
      %v555 = vadd.f32 0.0, %v554
      %v556 = vpop.f32.mrb[0].mxu0
      %v557 = vadd.f32 0.0, %v556
      %v558 = vpop.f32.mrb[0].mxu0
      %v559 = vpop.f32.mrb[0].mxu0
      %560 = vdwg.mxu0
      %v563 = vcombine.low %v555, %v557
      %v565 = vunpack.c.l.s4 1983009808
      %v566 = vunpack.c.0.s8 %v565
      %v567 = vlaneseq
      %v568 = vshrl.u32 %v567, 7
      %v569 = vsub.s32 %v566, %v568
      %v570 = vrot.slane %v563, %v569
      %v572 = vadd.f32 %v467, %v570
      %v573 = vxor.u32 %v572, 2147483648
      %v574 = vmul.f32 %v573, 1.442695
      %v575 = vpow.pop %v574
      %v576 = vadd.f32 %v575, 1.0
      %v577 = vrcp.pop %v576
      %v578 = vmul.f32 1.0, %v577
      %v580 = vrot.slane %v572, 2
      %v582 = vtanh.pop %v580
      %583 = vrot.lane.b32.xlu0 %v572, 64
      %v584 = vpop.permute.xlu0 %583
      %v585 = vrot.slane %v584, 2
      %v587 = vxor.u32 %v585, 2147483648
      %v588 = vmul.f32 %v587, 1.442695
      %v589 = vpow.pop %v588
      %v590 = vadd.f32 %v589, 1.0
      %v591 = vrcp.pop %v590
      %v592 = vmul.f32 1.0, %v591
      %v593 = vmul.f32 %v578, %v450
      %v594 = vmul.f32 %v578, %v582
      %596 = vrot.lane.b32.xlu0 %v594, 64
      %v597 = vpop.permute.xlu0 %596
      %v599 = vadd.f32 %v593, %v597
      %v600 = vtanh.pop %v599
      %602 = vrot.lane.b32.xlu0 %v600, 64
      %v603 = vpop.permute.xlu0 %602
      %v605 = vmul.f32 %v592, %v603
      %v606 = vsel %vm306, %v605, 0.0
      %v607 = vrot.slane %v606, 4
      %v608 = vadd.f32 %v606, %v607
      %v609 = vrot.slane %v608, 2
      %v610 = vadd.f32 %v608, %v609
      %v611 = vrot.slane %v610, 1
      %v612 = vadd.f32 %v610, %v611
      %613 = vst.msk [vmem:[%s143 + $0x2] sm:$0x1] %vm314, %v612
      %s614 = scalar_lea.vmem %s138, 6
      %v615 = vld [vmem:[%s614] sm:$0x3]
      %v616 = vunpack.c.l.bf16 %v615
      %v617 = vpack.c.bf16 %v605, %v605
      %v618 = vld [vmem:[%s1] sm:$0xff]
      %v619 = vld [vmem:[%s1 + $0x8] sm:$0xff]
      %v620 = vld [vmem:[%s1 + $0x10] sm:$0xff]
      %v621 = vld [vmem:[%s1 + $0x18] sm:$0xff]
      %v622 = vld [vmem:[%s1 + $0x20] sm:$0xff]
      %v623 = vld [vmem:[%s1 + $0x28] sm:$0xff]
      %v624 = vld [vmem:[%s1 + $0x30] sm:$0xff]
      %v625 = vld [vmem:[%s1 + $0x38] sm:$0xff]
      %v634 = vunpack.c.l.b16 %v618
      %v635 = vunpack.c.h.b16 %v618
      %v636 = vunpack.c.l.b16 %v619
      %v637 = vunpack.c.h.b16 %v619
      %v638 = vunpack.c.l.b16 %v620
      %v639 = vunpack.c.h.b16 %v620
      %v640 = vunpack.c.l.b16 %v621
      %v641 = vunpack.c.h.b16 %v621
      %v642 = vunpack.c.l.b16 %v622
      %v643 = vunpack.c.h.b16 %v622
      %v644 = vunpack.c.l.b16 %v623
      %v645 = vunpack.c.h.b16 %v623
      %v646 = vunpack.c.l.b16 %v624
      %v647 = vunpack.c.h.b16 %v624
      %v648 = vunpack.c.l.b16 %v625
      %v649 = vunpack.c.h.b16 %v625
      %v650 = vpack.c.b16 %v636, %v634
      %v651 = vpack.c.b16 %v637, %v635
      %v652 = vpack.c.b16 %v640, %v638
      %v653 = vpack.c.b16 %v641, %v639
      %v654 = vpack.c.b16 %v644, %v642
      %v655 = vpack.c.b16 %v645, %v643
      %v656 = vpack.c.b16 %v648, %v646
      %v657 = vpack.c.b16 %v649, %v647
      %v667 = vsel %vm205, %v617, 0
      %669 = vmatprep.subr.bf16.mxu0 %v651
      %670 = vmatpush1.bf16.msra.mxu0 %v650
      %671 = vmatprep.subr.bf16.mxu0 %v653
      %672 = vmatpush1.bf16.msra.mxu0 %v652
      %673 = vmatprep.subr.bf16.mxu0 %v655
      %674 = vmatpush1.bf16.msra.mxu0 %v654
      %675 = vmatprep.subr.bf16.mxu0 %v657
      %676 = vmatpush1.bf16.msra.mxu0 %v656
      %677 = vmatprep.subr.bf16.mxu0 0
      %678 = vmatpush1.bf16.msra.mxu0 0
      %679 = vmatprep.subr.bf16.mxu0 0
      %680 = vmatpush1.bf16.msra.mxu0 0
      %681 = vmatprep.subr.bf16.mxu0 0
      %682 = vmatpush1.bf16.msra.mxu0 0
      %683 = vmatprep.subr.bf16.mxu0 0
      %684 = vmatpush1.bf16.msra.mxu0 0
      %685 = vmatprep.subr.bf16.mxu0 0
      %686 = vmatpush1.bf16.msra.mxu0 0
      %687 = vmatprep.subr.bf16.mxu0 0
      %688 = vmatpush1.bf16.msra.mxu0 0
      %689 = vmatprep.subr.bf16.mxu0 0
      %690 = vmatpush1.bf16.msra.mxu0 0
      %691 = vmatprep.subr.bf16.mxu0 0
      %692 = vmatpush1.bf16.msra.mxu0 0
      %693 = vmatprep.subr.bf16.mxu0 0
      %694 = vmatpush1.bf16.msra.mxu0 0
      %695 = vmatprep.subr.bf16.mxu0 0
      %696 = vmatpush1.bf16.msra.mxu0 0
      %697 = vmatprep.subr.bf16.mxu0 0
      %698 = vmatpush1.bf16.msra.mxu0 0
      %699 = vmatprep.subr.bf16.mxu0 0
      %700 = vmatpush1.bf16.msra.mxu0 0
      %701 = vmatprep.mubr.bf16.mxu0 0
      %702 = vmatmul.mubr.bf16.gmra.mrb[0].mxu0 %v667
      %v703 = vpop.f32.mrb[0].mxu0
      %v704 = vadd.f32 0.0, %v703
      %v705 = vpop.f32.mrb[0].mxu0
      %v706 = vadd.f32 0.0, %v705
      %v707 = vpop.f32.mrb[0].mxu0
      %v708 = vpop.f32.mrb[0].mxu0
      %709 = vdwg.mxu0
      %v712 = vcombine.low %v704, %v706
      %v714 = vunpack.c.l.s4 1983009808
      %v715 = vunpack.c.0.s8 %v714
      %v716 = vlaneseq
      %v717 = vshrl.u32 %v716, 7
      %v718 = vsub.s32 %v715, %v717
      %v719 = vrot.slane %v712, %v718
      %v721 = vadd.f32 %v616, %v719
      %v722 = vxor.u32 %v721, 2147483648
      %v723 = vmul.f32 %v722, 1.442695
      %v724 = vpow.pop %v723
      %v725 = vadd.f32 %v724, 1.0
      %v726 = vrcp.pop %v725
      %v727 = vmul.f32 1.0, %v726
      %v729 = vrot.slane %v721, 2
      %v731 = vtanh.pop %v729
      %732 = vrot.lane.b32.xlu0 %v721, 64
      %v733 = vpop.permute.xlu0 %732
      %v734 = vrot.slane %v733, 2
      %v736 = vxor.u32 %v734, 2147483648
      %v737 = vmul.f32 %v736, 1.442695
      %v738 = vpow.pop %v737
      %v739 = vadd.f32 %v738, 1.0
      %v740 = vrcp.pop %v739
      %v741 = vmul.f32 1.0, %v740
      %v742 = vmul.f32 %v727, %v599
      %v743 = vmul.f32 %v727, %v731
      %745 = vrot.lane.b32.xlu0 %v743, 64
      %v746 = vpop.permute.xlu0 %745
      %v748 = vadd.f32 %v742, %v746
      %v749 = vtanh.pop %v748
      %751 = vrot.lane.b32.xlu0 %v749, 64
      %v752 = vpop.permute.xlu0 %751
      %v754 = vmul.f32 %v741, %v752
      %v755 = vsel %vm306, %v754, 0.0
      %v756 = vrot.slane %v755, 4
      %v757 = vadd.f32 %v755, %v756
      %v758 = vrot.slane %v757, 2
      %v759 = vadd.f32 %v757, %v758
      %v760 = vrot.slane %v759, 1
      %v761 = vadd.f32 %v759, %v760
      %762 = vst.msk [vmem:[%s143 + $0x3] sm:$0x1] %vm314, %v761
      %763 = vst.msk [vmem:[#allocation2] sm:$0x3] %vm306, %v754
      %v766 = vunpack.c.l.s4 1983009808
      %v767 = vunpack.c.0.s8 %v766
      %v768 = vlaneseq
      %v769 = vshrl.u32 %v768, 7
      %v770 = vsub.s32 %v767, %v769
      %v771 = vrot.slane %v748, %v770
      %772 = vrot.lane.b32.xlu0 %v771, 64
      %v773 = vpop.permute.xlu0 %772
      %775 = vst.msk [vmem:[#allocation3] sm:$0x3] %vm306, %v773
      %p776 = scmp.lt.s32.totalorder %s13, 1
      %s777 = scalar_select %p776, %s13, 1
      %s778 = smul.addr %s777, 4
      %s779 = scalar_lea.vmem %s2, %s778
      // Predicated region
      $region33: #{batch_descriptor_forward.3} parent=27 // pred_check
        %p780 = pneg %p78
      $region34: #{batch_descriptor_forward.3} parent=27 // pred_check_branch
        %782 = sbr.rel (%p780) target = $region36
      $region35: #{batch_descriptor_forward.3} parent=27 // pred_region
        _
      $region36: #{batch_descriptor_forward.3} parent=27 // pred_fallthru
        _
    $region28: #{batch_descriptor_forward.3} parent=5 // pred_fallthru
      _
    %p783 = scmp.le.s32.totalorder 2, %s8
    // Predicated region
    $region37: #{batch_descriptor_forward.3} parent=5 // pred_check
      %p784 = pneg %p783
    $region38: #{batch_descriptor_forward.3} parent=5 // pred_check_branch
      %786 = sbr.rel (%p784) target = $region40
    $region39: #{batch_descriptor_forward.3} parent=5 // pred_region
      %s787 = ssub.s32 %s8, 2
      // Predicated region
      $region41: #{batch_descriptor_forward.3} parent=39 // pred_check
        %p788 = pneg %p84
      $region42: #{batch_descriptor_forward.3} parent=39 // pred_check_branch
        %790 = sbr.rel (%p788) target = $region44
      $region43: #{batch_descriptor_forward.3} parent=39 // pred_region
        %p791 = scmp.lt.s32.totalorder %s14, 1
        %s792 = scalar_select %p791, %s14, 1
        %s793 = smul.addr %s792, 4
        %s794 = scalar_lea.vmem %s2, %s793
      $region44: #{batch_descriptor_forward.3} parent=39 // pred_fallthru
        _
    $region40: #{batch_descriptor_forward.3} parent=5 // pred_fallthru
      _
  $region6: #{batch_descriptor_forward.3} parent=0 // loop_footer
    %s12 = sadd.s32 1, %s8
  $region7: #{batch_descriptor_forward.3} parent=0 // loop_footer_branch
    %7 = sbr.rel target = $region3
  $region8: #{batch_descriptor_forward.3} parent=0 // loop_exit
    _

</llo_original>
